<compile_context>
chip_gen: v5e
topology: v5e:2x2
jax: 0.10.0
libtpu: 0.0.40
codegen_flags: <defaults>
</compile_context>

<pallas_src>
import jax
import jax.numpy as jnp
import numpy as np
from jax.experimental import pallas as pl
from jax.experimental.pallas import tpu as pltpu


NEG_BIG = -1e30   # finite "minus infinity": avoids inf-inf NaNs in the online softmax


def edge_layer_kernel(eb_start_ref, eb_count_ref,           # scalar prefetch (SMEM)
                      dst_ref, logit_ref, src2_ref, w_ref,  # VMEM edge-block streams
                      out_ref,                               # (TN, Dp) f32, resident over et
                      m_scr, l_scr):                         # (TN, 1) f32 softmax stats
    del eb_start_ref                                         # consumed by the index maps only
    nt = pl.program_id(0)            # destination-node tile (parallel axis)
    et = pl.program_id(1)            # edge-block step within the node tile (reduction)
    TN = out_ref.shape[0]
    TE = dst_ref.shape[-1]

    @pl.when(et == 0)
    def _init():
        out_ref[...] = jnp.zeros_like(out_ref)
        m_scr[...] = jnp.full_like(m_scr, NEG_BIG)
        l_scr[...] = jnp.zeros_like(l_scr)

    # Only process edge blocks inside this node tile's CSR range.
    @pl.when(et < eb_count_ref[nt])
    def _update():
        dst_row = dst_ref[0]                                  # (1, TE) int32, lane-dense
        logit_row = logit_ref[0]                              # (1, TE) f32,  lane-dense

        # node-local one-hot: sel[n, e] = (dst[e] == nt*TN + n)   (VPU only)
        node_ids = nt * TN + jax.lax.broadcasted_iota(jnp.int32, (TN, TE), 0)
        sel = node_ids == dst_row                             # (TN, TE)

        # --- per-destination online softmax, one update per edge BLOCK ---
        blk_max = jnp.max(jnp.where(sel, logit_row, NEG_BIG), axis=1, keepdims=True)
        m_old = m_scr[...]
        m_new = jnp.maximum(m_old, blk_max)                   # (TN, 1)
        alpha = jnp.exp(m_old - m_new)                        # rescale of earlier partials
        p = jnp.exp(jnp.where(sel, logit_row - m_new, NEG_BIG))   # (TN, TE); 0 where !sel
        l_scr[...] = alpha * l_scr[...] + jnp.sum(p, axis=1, keepdims=True)
        m_scr[...] = m_new

        # --- comp = [src*out_mask | src*in_mask] @ [[w_i],[w_o]]   (MXU, K = 2*Dp) ---
        comp = jnp.dot(src2_ref[...], w_ref[...],
                       preferred_element_type=jnp.float32)    # (TE, Dp) f32

        # --- dst-scatter as a matmul: out[n,:] += sum_e p[n,e] * comp[e,:] ---
        out_ref[...] = alpha * out_ref[...] + jnp.dot(
            p, comp, preferred_element_type=jnp.float32)      # (TN, TE) x (TE, Dp)

    # Finalize once per node tile: softmax denominator + activation.
    @pl.when(et == pl.num_programs(1) - 1)
    def _finalize():
        l = l_scr[...]
        safe_l = jnp.where(l > 0.0, l, 1.0)                   # isolated nodes -> 0
        out_ref[...] = jnp.tanh(out_ref[...] * pl.reciprocal(safe_l, approx=False))


def _round_up(x, m):
    return ((x + m - 1) // m) * m


def edge_layer_pallas(ent_emb, rel_emb, src, dst, rel_id, in_mask, out_mask,
                      w_i, w_o, *, edge_tile=128, node_tile=128):
    """EdgeLayer.forward (bn=None path).

    edge_tile / node_tile = 128 is a good v5e default; use 256 on v6e / v7x so
    both MXU operand dims reach 256.  Edge preprocessing (sort by destination,
    CSR block pointers) runs eagerly in the wrapper."""
    N, D = ent_emb.shape
    E = int(src.shape[0])
    TE = int(edge_tile)
    TN = int(node_tile)
    Dp = _round_up(D, 128)                 # lane-dense feature axis
    Np = _round_up(N, TN)
    num_node_tiles = Np // TN
    E_pad = _round_up(max(E, 1), TE)
    num_blocks = E_pad // TE
    pad_e = E_pad - E

    # ---- CSR preprocessing (host): sort edges by destination node ----
    dst_np = np.asarray(dst, dtype=np.int64)
    order = np.argsort(dst_np, kind="stable")
    dst_sorted = dst_np[order]
    src_sorted = np.asarray(src)[order]
    rel_sorted = np.asarray(rel_id)[order]
    outm = np.asarray(out_mask, dtype=np.float32)[order]
    inm = np.asarray(in_mask, dtype=np.float32)[order]

    # per-node-tile contiguous edge-block range ("row pointers" in blocks of TE)
    bounds = np.searchsorted(dst_sorted, np.arange(num_node_tiles + 1) * TN,
                             side="left")
    lo_blk = bounds[:-1] // TE
    hi_blk = -(-bounds[1:] // TE)
    eb_start = np.minimum(lo_blk, num_blocks - 1).astype(np.int32)
    eb_count = np.clip(hi_blk - lo_blk, 1, num_blocks).astype(np.int32)
    max_blocks = int(eb_count.max())

    # ---- O(E*D) gathers / f32 logits / masked source stream (plain XLA) ----
    rel_rows = jnp.take(rel_emb, jnp.asarray(rel_sorted, dtype=jnp.int32), axis=0)
    dst_rows = jnp.take(ent_emb, jnp.asarray(dst_sorted, dtype=jnp.int32), axis=0)
    src_rows = jnp.take(ent_emb, jnp.asarray(src_sorted, dtype=jnp.int32), axis=0)
    logits = jnp.sum(rel_rows * dst_rows, axis=-1)            # (E,) f32 (exact)

    def pad_feat(x):
        return x if D == Dp else jnp.pad(x, ((0, 0), (0, Dp - D)))

    src_o = pad_feat(src_rows * jnp.asarray(outm)[:, None])
    src_i = pad_feat(src_rows * jnp.asarray(inm)[:, None])
    src2 = jnp.concatenate([src_o, src_i], axis=-1).astype(jnp.bfloat16)   # (E, 2*Dp)

    if pad_e:
        src2 = jnp.pad(src2, ((0, pad_e), (0, 0)))
        logits = jnp.pad(logits, (0, pad_e))
        dst_sorted = np.concatenate(
            [dst_sorted, np.full((pad_e,), Np, dtype=np.int64)])  # sentinel: never selected

    dst_blocks = jnp.asarray(dst_sorted, dtype=jnp.int32).reshape(num_blocks, 1, TE)
    logit_blocks = logits.astype(jnp.float32).reshape(num_blocks, 1, TE)

    # stacked weights: [src*out_mask | src*in_mask] @ [[w_i], [w_o]]
    w_cat = jnp.concatenate(
        [jnp.pad(w_i, ((0, Dp - D), (0, Dp - D))),
         jnp.pad(w_o, ((0, Dp - D), (0, Dp - D)))], axis=0).astype(jnp.bfloat16)

    def _blk(nt, et, eb_start_ref, eb_count_ref):
        # clamp: skipped steps re-address the previous block (no extra DMA)
        return eb_start_ref[nt] + jnp.minimum(et, eb_count_ref[nt] - 1)

    grid_spec = pltpu.PrefetchScalarGridSpec(
        num_scalar_prefetch=2,
        grid=(num_node_tiles, max_blocks),
        in_specs=[
            pl.BlockSpec((1, 1, TE), lambda nt, et, s, c: (_blk(nt, et, s, c), 0, 0)),
            pl.BlockSpec((1, 1, TE), lambda nt, et, s, c: (_blk(nt, et, s, c), 0, 0)),
            pl.BlockSpec((TE, 2 * Dp), lambda nt, et, s, c: (_blk(nt, et, s, c), 0)),
            pl.BlockSpec((2 * Dp, Dp), lambda nt, et, s, c: (0, 0)),
        ],
        out_specs=pl.BlockSpec((TN, Dp), lambda nt, et, s, c: (nt, 0)),
        scratch_shapes=[
            pltpu.VMEM((TN, 1), jnp.float32),    # m: running max per destination node
            pltpu.VMEM((TN, 1), jnp.float32),    # l: softmax denominator per node
        ],
    )

    visited = int(eb_count.sum())
    cost = pl.CostEstimate(
        flops=visited * (2 * TE * 2 * Dp * Dp + 2 * TN * TE * Dp),
        transcendentals=visited * (TN * TE + 2 * TN) + Np * Dp,
        bytes_accessed=(visited * (TE * 2 * Dp * 2 + 2 * TE * 4)
                        + Np * Dp * 4 + 2 * Dp * Dp * 2),
    )

    out_pad = pl.pallas_call(
        edge_layer_kernel,
        out_shape=jax.ShapeDtypeStruct((Np, Dp), jnp.float32),
        grid_spec=grid_spec,
        compiler_params=pltpu.CompilerParams(
            dimension_semantics=("parallel", "arbitrary"),   # node tiles split across cores
            vmem_limit_bytes=48 * 1024 * 1024),              # v7x (64 MiB/TC) headroom
        cost_estimate=cost,
    )(jnp.asarray(eb_start), jnp.asarray(eb_count),
      dst_blocks, logit_blocks, src2, w_cat)

    return out_pad[:N, :D]


def edge_layer_ref(ent_emb, rel_emb, src, dst, rel_id, in_mask, out_mask, w_i, w_o):
    """Pure-JAX f32 reference (segment ops) mirroring the DGL semantics."""
    N = ent_emb.shape[0]
    edge_rel = rel_emb[rel_id]
    dst_emb = ent_emb[dst]
    src_emb = ent_emb[src]
    logits = jnp.sum(edge_rel * dst_emb, axis=-1)
    grp_max = jax.ops.segment_max(logits, dst, num_segments=N)
    exp_l = jnp.exp(logits - grp_max[dst])
    grp_sum = jax.ops.segment_sum(exp_l, dst, num_segments=N)
    norm = exp_l / grp_sum[dst]
    h_out = src_emb @ w_i
    h_in = src_emb @ w_o
    comp = jnp.zeros_like(h_out)
    comp = jnp.where(out_mask[:, None] > 0.5, h_out, comp)
    comp = jnp.where(in_mask[:, None] > 0.5, h_in, comp)
    weighted = comp * norm[:, None]
    neigh = jax.ops.segment_sum(weighted, dst, num_segments=N)
    return jnp.tanh(neigh)


if __name__ == "__main__":
    # Small synthetic knowledge graph.
    N_ENT = 16      # nodes
    N_REL = 4       # relations (2*N_REL with inverses)
    E = 64          # edges (first half out/original, second half in/inverse)
    H_DIM = 32      # h_dim

    key = jax.random.PRNGKey(0)
    k_ent, k_rel, k_src, k_dst, k_rid, k_wi, k_wo = jax.random.split(key, 7)

    ent_emb = jax.random.normal(k_ent, (N_ENT, H_DIM), dtype=jnp.float32) * 0.1
    rel_emb = jax.random.normal(k_rel, (2 * N_REL, H_DIM), dtype=jnp.float32) * 0.1

    src = jax.random.randint(k_src, (E,), 0, N_ENT)
    dst = jax.random.randint(k_dst, (E,), 0, N_ENT)
    base_rel = jax.random.randint(k_rid, (E,), 0, N_REL)
    # out edges carry original relation ids, in edges carry inverse relation ids
    out_mask = jnp.concatenate(
        [jnp.ones((E // 2,), jnp.float32), jnp.zeros((E // 2,), jnp.float32)])
    in_mask = 1.0 - out_mask
    rel_id = jnp.where(out_mask > 0.5, base_rel, base_rel + N_REL)

    # deterministic "xavier-like" params (utils.get_param(h_dim, h_dim))
    scale = (2.0 / (H_DIM + H_DIM)) ** 0.5
    w_i = jax.random.normal(k_wi, (H_DIM, H_DIM), dtype=jnp.float32) * scale
    w_o = jax.random.normal(k_wo, (H_DIM, H_DIM), dtype=jnp.float32) * scale
    # note: self.neigh_w exists in __init__ but is unused in forward.

    out = edge_layer_pallas(ent_emb, rel_emb, src, dst, rel_id, in_mask,
                            out_mask, w_i, w_o, edge_tile=128, node_tile=128)
    out = jax.block_until_ready(out)

    ref = edge_layer_ref(ent_emb, rel_emb, src, dst, rel_id, in_mask, out_mask,
                         w_i, w_o)
    # bf16 is only used for the comp matmul operands; logits/softmax/aggregation are f32
    np.testing.assert_allclose(np.asarray(out), np.asarray(ref),
                               rtol=2e-2, atol=1e-2)
    print("KERNEL_OK")
</pallas_src>

<mosaic_0001>
module attributes {stable_mosaic.version = 11 : i64} {
  func.func @edge_layer_kernel(%arg0: i32, %arg1: i32, %arg2: memref<1xi32, #tpu.memory_space<smem>>, %arg3: memref<1xi32, #tpu.memory_space<smem>>, %arg4: memref<1x1x128xi32, #tpu.memory_space<vmem>>, %arg5: memref<1x1x128xf32, #tpu.memory_space<vmem>>, %arg6: memref<128x256xbf16, #tpu.memory_space<vmem>>, %arg7: memref<256x128xbf16, #tpu.memory_space<vmem>>, %arg8: memref<128x128xf32, #tpu.memory_space<vmem>>, %arg9: memref<128x1xf32, #tpu.memory_space<vmem>>, %arg10: memref<128x1xf32, #tpu.memory_space<vmem>>) attributes {dimension_semantics = [#tpu.dimension_semantics<parallel>, #tpu.dimension_semantics<arbitrary>], iteration_bounds = array<i64: 1, 1>, scalar_prefetch = 2 : i64, scratch_operands = 2 : i64, tpu.core_type = #tpu.core_type<tc>, window_params = [{transform_indices = @transform_0, window_bounds = array<i64: 1, 1, 128>}, {transform_indices = @transform_1, window_bounds = array<i64: 1, 1, 128>}, {transform_indices = @transform_2, window_bounds = array<i64: 128, 256>}, {pipeline_mode = #tpu.pipeline_mode<synchronous>, transform_indices = @transform_3, window_bounds = array<i64: 256, 128>}, {transform_indices = @transform_4, window_bounds = array<i64: 128, 128>}]} {
    %c0_i32 = arith.constant 0 : i32
    %0 = arith.cmpi eq, %arg1, %c0_i32 : i32
    %1 = arith.extui %0 : i1 to i32
    %c0_i32_0 = arith.constant 0 : i32
    %2 = arith.cmpi ne, %1, %c0_i32_0 : i32
    scf.if %2 {
      %cst = arith.constant 0.000000e+00 : f32
      %11 = vector.broadcast %cst : f32 to vector<128x128xf32>
      %c0 = arith.constant 0 : index
      %c0_4 = arith.constant 0 : index
      %12 = vector.load %arg8[%c0, %c0_4] : memref<128x128xf32, #tpu.memory_space<vmem>>, vector<128x128xf32>
      tpu.vector_store %arg8[%c0, %c0_4], %11 {strides = array<i32>} : memref<128x128xf32, #tpu.memory_space<vmem>>, vector<128x128xf32>,
      %cst_5 = arith.constant -1.000000e+30 : f32
      %13 = vector.broadcast %cst_5 : f32 to vector<128x1xf32>
      %c0_6 = arith.constant 0 : index
      %c0_7 = arith.constant 0 : index
      %14 = vector.load %arg9[%c0_6, %c0_7] : memref<128x1xf32, #tpu.memory_space<vmem>>, vector<128x1xf32>
      tpu.vector_store %arg9[%c0_6, %c0_7], %13 {strides = array<i32>} : memref<128x1xf32, #tpu.memory_space<vmem>>, vector<128x1xf32>,
      %cst_8 = arith.constant 0.000000e+00 : f32
      %15 = vector.broadcast %cst_8 : f32 to vector<128x1xf32>
      %c0_9 = arith.constant 0 : index
      %c0_10 = arith.constant 0 : index
      %16 = vector.load %arg10[%c0_9, %c0_10] : memref<128x1xf32, #tpu.memory_space<vmem>>, vector<128x1xf32>
      tpu.vector_store %arg10[%c0_9, %c0_10], %15 {strides = array<i32>} : memref<128x1xf32, #tpu.memory_space<vmem>>, vector<128x1xf32>,
    } else {
    }
    %3 = arith.index_cast %arg0 : i32 to index
    %4 = memref.load %arg3[%3] : memref<1xi32, #tpu.memory_space<smem>>
    %5 = arith.cmpi slt, %arg1, %4 : i32
    %6 = arith.extui %5 : i1 to i32
    %c0_i32_1 = arith.constant 0 : i32
    %7 = arith.cmpi ne, %6, %c0_i32_1 : i32
    scf.if %7 {
      %c0 = arith.constant 0 : index
      %c0_4 = arith.constant 0 : index
      %c0_5 = arith.constant 0 : index
      %11 = vector.load %arg4[%c0, %c0_4, %c0_5] : memref<1x1x128xi32, #tpu.memory_space<vmem>>, vector<1x1x128xi32>
      %12 = vector.shape_cast %11 : vector<1x1x128xi32> to vector<1x128xi32>
      %c0_6 = arith.constant 0 : index
      %c0_7 = arith.constant 0 : index
      %c0_8 = arith.constant 0 : index
      %13 = vector.load %arg5[%c0_6, %c0_7, %c0_8] : memref<1x1x128xf32, #tpu.memory_space<vmem>>, vector<1x1x128xf32>
      %14 = vector.shape_cast %13 : vector<1x1x128xf32> to vector<1x128xf32>
      %c128_i32 = arith.constant 128 : i32
      %15 = arith.muli %arg0, %c128_i32 : i32
      %16 = tpu.iota {dimensions = array<i32: 0>} : vector<128x128xi32>
      %17 = vector.broadcast %15 : i32 to vector<128x128xi32>
      %18 = arith.addi %17, %16 : vector<128x128xi32>
      %19 = vector.broadcast %12 : vector<1x128xi32> to vector<128x128xi32>
      %20 = arith.cmpi eq, %18, %19 : vector<128x128xi32>
      %cst = arith.constant -1.000000e+30 : f32
      %21 = vector.shape_cast %14 : vector<1x128xf32> to vector<1x128xf32>
      %22 = vector.broadcast %21 : vector<1x128xf32> to vector<128x128xf32>
      %23 = vector.broadcast %cst : f32 to vector<128x128xf32>
      %24 = arith.select %20, %22, %23 : vector<128x128xi1>, vector<128x128xf32>
      %cst_9 = arith.constant dense<0xFF800000> : vector<128xf32>
      %25 = vector.multi_reduction <maximumf>, %24, %cst_9 [1] : vector<128x128xf32> to vector<128xf32>
      %26 = vector.shape_cast %25 : vector<128xf32> to vector<128x1xf32>
      %c0_10 = arith.constant 0 : index
      %c0_11 = arith.constant 0 : index
      %27 = vector.load %arg9[%c0_10, %c0_11] : memref<128x1xf32, #tpu.memory_space<vmem>>, vector<128x1xf32>
      %28 = arith.maximumf %27, %26 : vector<128x1xf32>
      %29 = arith.subf %27, %28 : vector<128x1xf32>
      %30 = math.exp %29 : vector<128x1xf32>
      %31 = vector.broadcast %14 : vector<1x128xf32> to vector<128x128xf32>
      %32 = vector.broadcast %28 : vector<128x1xf32> to vector<128x128xf32>
      %33 = arith.subf %31, %32 : vector<128x128xf32>
      %cst_12 = arith.constant -1.000000e+30 : f32
      %34 = vector.broadcast %cst_12 : f32 to vector<128x128xf32>
      %35 = arith.select %20, %33, %34 : vector<128x128xi1>, vector<128x128xf32>
      %36 = math.exp %35 : vector<128x128xf32>
      %c0_13 = arith.constant 0 : index
      %c0_14 = arith.constant 0 : index
      %37 = vector.load %arg10[%c0_13, %c0_14] : memref<128x1xf32, #tpu.memory_space<vmem>>, vector<128x1xf32>
      %38 = arith.mulf %30, %37 : vector<128x1xf32>
      %cst_15 = arith.constant dense<0.000000e+00> : vector<128xf32>
      %39 = vector.multi_reduction <add>, %36, %cst_15 [1] : vector<128x128xf32> to vector<128xf32>
      %40 = vector.shape_cast %39 : vector<128xf32> to vector<128x1xf32>
      %41 = arith.addf %38, %40 : vector<128x1xf32>
      %c0_16 = arith.constant 0 : index
      %c0_17 = arith.constant 0 : index
      %42 = vector.load %arg10[%c0_16, %c0_17] : memref<128x1xf32, #tpu.memory_space<vmem>>, vector<128x1xf32>
      tpu.vector_store %arg10[%c0_16, %c0_17], %41 {strides = array<i32>} : memref<128x1xf32, #tpu.memory_space<vmem>>, vector<128x1xf32>,
      %c0_18 = arith.constant 0 : index
      %c0_19 = arith.constant 0 : index
      %43 = vector.load %arg9[%c0_18, %c0_19] : memref<128x1xf32, #tpu.memory_space<vmem>>, vector<128x1xf32>
      tpu.vector_store %arg9[%c0_18, %c0_19], %28 {strides = array<i32>} : memref<128x1xf32, #tpu.memory_space<vmem>>, vector<128x1xf32>,
      %c0_20 = arith.constant 0 : index
      %c0_21 = arith.constant 0 : index
      %44 = vector.load %arg6[%c0_20, %c0_21] : memref<128x256xbf16, #tpu.memory_space<vmem>>, vector<128x256xbf16>
      %c0_22 = arith.constant 0 : index
      %c0_23 = arith.constant 0 : index
      %45 = vector.load %arg7[%c0_22, %c0_23] : memref<256x128xbf16, #tpu.memory_space<vmem>>, vector<256x128xbf16>
      %cst_24 = arith.constant dense<0.000000e+00> : vector<128x128xf32>
      %46 = tpu.matmul %44, %45, %cst_24 {dimension_numbers = #tpu.dot_dimension_numbers<[1], [0], [0], [1], [0, 0, 1, 1], [], []>} : vector<128x256xbf16>, vector<256x128xbf16>, vector<128x128xf32> -> vector<128x128xf32>
      %c0_25 = arith.constant 0 : index
      %c0_26 = arith.constant 0 : index
      %47 = vector.load %arg8[%c0_25, %c0_26] : memref<128x128xf32, #tpu.memory_space<vmem>>, vector<128x128xf32>
      %48 = vector.broadcast %30 : vector<128x1xf32> to vector<128x128xf32>
      %49 = arith.mulf %48, %47 : vector<128x128xf32>
      %cst_27 = arith.constant dense<0.000000e+00> : vector<128x128xf32>
      %50 = tpu.matmul %36, %46, %cst_27 {dimension_numbers = #tpu.dot_dimension_numbers<[1], [0], [0], [1], [0, 0, 1, 1], [], []>} : vector<128x128xf32>, vector<128x128xf32>, vector<128x128xf32> -> vector<128x128xf32>
      %51 = arith.addf %49, %50 : vector<128x128xf32>
      %c0_28 = arith.constant 0 : index
      %c0_29 = arith.constant 0 : index
      %52 = vector.load %arg8[%c0_28, %c0_29] : memref<128x128xf32, #tpu.memory_space<vmem>>, vector<128x128xf32>
      tpu.vector_store %arg8[%c0_28, %c0_29], %51 {strides = array<i32>} : memref<128x128xf32, #tpu.memory_space<vmem>>, vector<128x128xf32>,
    } else {
    }
    %c0_i32_2 = arith.constant 0 : i32
    %8 = arith.cmpi eq, %arg1, %c0_i32_2 : i32
    %9 = arith.extui %8 : i1 to i32
    %c0_i32_3 = arith.constant 0 : i32
    %10 = arith.cmpi ne, %9, %c0_i32_3 : i32
    scf.if %10 {
      %c0 = arith.constant 0 : index
      %c0_4 = arith.constant 0 : index
      %11 = vector.load %arg10[%c0, %c0_4] : memref<128x1xf32, #tpu.memory_space<vmem>>, vector<128x1xf32>
      %cst = arith.constant 0.000000e+00 : f32
      %12 = vector.broadcast %cst : f32 to vector<128x1xf32>
      %13 = arith.cmpf ogt, %11, %12 : vector<128x1xf32>
      %cst_5 = arith.constant 1.000000e+00 : f32
      %14 = vector.broadcast %cst_5 : f32 to vector<128x1xf32>
      %15 = arith.select %13, %11, %14 : vector<128x1xi1>, vector<128x1xf32>
      %c0_6 = arith.constant 0 : index
      %c0_7 = arith.constant 0 : index
      %16 = vector.load %arg8[%c0_6, %c0_7] : memref<128x128xf32, #tpu.memory_space<vmem>>, vector<128x128xf32>
      %17 = tpu.reciprocal %15 : vector<128x1xf32> -> vector<128x1xf32>
      %18 = vector.broadcast %17 : vector<128x1xf32> to vector<128x128xf32>
      %19 = arith.mulf %16, %18 : vector<128x128xf32>
      %20 = math.tanh %19 : vector<128x128xf32>
      %c0_8 = arith.constant 0 : index
      %c0_9 = arith.constant 0 : index
      %21 = vector.load %arg8[%c0_8, %c0_9] : memref<128x128xf32, #tpu.memory_space<vmem>>, vector<128x128xf32>
      tpu.vector_store %arg8[%c0_8, %c0_9], %20 {strides = array<i32>} : memref<128x128xf32, #tpu.memory_space<vmem>>, vector<128x128xf32>,
    } else {
    }
    return
  }
  func.func @transform_0(%arg0: i32, %arg1: i32, %arg2: memref<1xi32, #tpu.memory_space<smem>>, %arg3: memref<1xi32, #tpu.memory_space<smem>>) -> (i32, i32, i32) {
    %0 = arith.index_cast %arg0 : i32 to index
    %1 = memref.load %arg2[%0] : memref<1xi32, #tpu.memory_space<smem>>
    %2 = arith.index_cast %arg0 : i32 to index
    %3 = memref.load %arg3[%2] : memref<1xi32, #tpu.memory_space<smem>>
    %c1_i32 = arith.constant 1 : i32
    %4 = arith.subi %3, %c1_i32 : i32
    %5 = arith.minsi %arg1, %4 : i32
    %6 = arith.addi %1, %5 : i32
    %c0_i32 = arith.constant 0 : i32
    %c0_i32_0 = arith.constant 0 : i32
    %c0_i32_1 = arith.constant 0 : i32
    return %6, %c0_i32, %c0_i32_0 : i32, i32, i32
  }
  func.func @transform_1(%arg0: i32, %arg1: i32, %arg2: memref<1xi32, #tpu.memory_space<smem>>, %arg3: memref<1xi32, #tpu.memory_space<smem>>) -> (i32, i32, i32) {
    %0 = arith.index_cast %arg0 : i32 to index
    %1 = memref.load %arg2[%0] : memref<1xi32, #tpu.memory_space<smem>>
    %2 = arith.index_cast %arg0 : i32 to index
    %3 = memref.load %arg3[%2] : memref<1xi32, #tpu.memory_space<smem>>
    %c1_i32 = arith.constant 1 : i32
    %4 = arith.subi %3, %c1_i32 : i32
    %5 = arith.minsi %arg1, %4 : i32
    %6 = arith.addi %1, %5 : i32
    %c0_i32 = arith.constant 0 : i32
    %c0_i32_0 = arith.constant 0 : i32
    %c0_i32_1 = arith.constant 0 : i32
    return %6, %c0_i32, %c0_i32_0 : i32, i32, i32
  }
  func.func @transform_2(%arg0: i32, %arg1: i32, %arg2: memref<1xi32, #tpu.memory_space<smem>>, %arg3: memref<1xi32, #tpu.memory_space<smem>>) -> (i32, i32) {
    %0 = arith.index_cast %arg0 : i32 to index
    %1 = memref.load %arg2[%0] : memref<1xi32, #tpu.memory_space<smem>>
    %2 = arith.index_cast %arg0 : i32 to index
    %3 = memref.load %arg3[%2] : memref<1xi32, #tpu.memory_space<smem>>
    %c1_i32 = arith.constant 1 : i32
    %4 = arith.subi %3, %c1_i32 : i32
    %5 = arith.minsi %arg1, %4 : i32
    %6 = arith.addi %1, %5 : i32
    %c0_i32 = arith.constant 0 : i32
    %c0_i32_0 = arith.constant 0 : i32
    return %6, %c0_i32 : i32, i32
  }
  func.func @transform_3(%arg0: i32, %arg1: i32, %arg2: memref<1xi32, #tpu.memory_space<smem>>, %arg3: memref<1xi32, #tpu.memory_space<smem>>) -> (i32, i32) {
    %c0_i32 = arith.constant 0 : i32
    %c0_i32_0 = arith.constant 0 : i32
    %c0_i32_1 = arith.constant 0 : i32
    return %c0_i32, %c0_i32_0 : i32, i32
  }
  func.func @transform_4(%arg0: i32, %arg1: i32, %arg2: memref<1xi32, #tpu.memory_space<smem>>, %arg3: memref<1xi32, #tpu.memory_space<smem>>) -> (i32, i32) {
    %c0_i32 = arith.constant 0 : i32
    %c0_i32_0 = arith.constant 0 : i32
    return %arg0, %c0_i32 : i32, i32
  }
}

</mosaic_0001>

<llo_original>
// kernel: tpu_custom_call.1
$region0: #{tpu_custom_call.1}
  #allocation0 [shape = 'u32[]', space=smem, size = 0x4, offset = 0x4, fixed_abs, tag = 'smem constant byte address 0x4 - core index']
  #allocation1 [shape = 'u32[72,128]{1,0:T(1,128)}', space=vmem, size = 0x9000, scoped, tag = 'internal scratch']
  #allocation2 [shape = 'f32[128,1]{1,0:T(8,128)}', space=vmem, size = 0x10000, scoped, tag = 'scratch operand']
  #allocation3 [shape = 'f32[128,1]{1,0:T(8,128)}', space=vmem, size = 0x10000, scoped, tag = 'scratch operand']
  #allocation4 [shape = 's32[1]{0}', space=sflag, size = 0x4, scoped, tag = 'scoped memory for tpu_custom_call.1']
  #allocation5 [shape = 's32[1]{0:T(128)S(6)}', space=smem, size = 0x200, scoped, tag = 'prefetched SMEM operand 0']
  #allocation6 [shape = 's32[1]{0:T(128)S(6)}', space=smem, size = 0x200, scoped, tag = 'prefetched SMEM operand 1']
  %s0 = inlined_call_operand.<no memory space> [shape: s32[1], index: 0, kind: input, shape index: {}]
  %s1 = inlined_call_operand.<no memory space> [shape: s32[1], index: 1, kind: input, shape index: {}]
  %s2 = inlined_call_operand.vmem [shape: s32[1,1,128], index: 2, kind: input, shape index: {}]
  %s3 = inlined_call_operand.vmem [shape: f32[1,1,128], index: 3, kind: input, shape index: {}]
  %s4 = inlined_call_operand.hbm [shape: bf16[128,256], index: 4, kind: input, shape index: {}]
  %s5 = inlined_call_operand.hbm [shape: bf16[256,128], index: 5, kind: input, shape index: {}]
  %s6 = inlined_call_operand.hbm [shape: f32[128,128], index: 6, kind: output, shape index: {}]
  %s7 = sld [smem:[#allocation0]]
  $region46: #{tpu_custom_call.1} parent=0
    _
  %s9 = ssub.s32 1, %s7
  %s10 = scalar_select 0, %s9, %s7
  %11 = sst [smem:[#allocation5]] %s0
  %12 = sst [smem:[#allocation6]] %s1
  $region1: #{tpu_custom_call.1} parent=0
    #allocation7 [shape = 'u8[65536]{0}', space=vmem, size = 0x10000, scoped, tag = 'input window, operand 4, single buffered']
    #allocation8 [shape = 's32[1]{0}', space=sflag, size = 0x4, scoped, tag = 'scoped memory for tpu_custom_call.1']
    #allocation9 [shape = 's32[1]{0}', space=sflag, size = 0x4, scoped, tag = 'scoped memory for tpu_custom_call.1']
    #allocation10 [shape = 'u8[65536]{0}', space=vmem, size = 0x10000, scoped, tag = 'input window, operand 5, single buffered']
    #allocation11 [shape = 's32[1]{0}', space=sflag, size = 0x4, scoped, tag = 'scoped memory for tpu_custom_call.1']
    #allocation12 [shape = 'u8[65536]{0}', space=vmem, size = 0x10000, scoped, tag = 'output window, operand 0, single buffered']
    %13 = vsyncpa [#allocation8], 0
    %14 = vsyncpa [#allocation11], 0
    %15 = vsyncpa [#allocation9], 0
    // Predicated region
    $region2: #{tpu_custom_call.1} parent=1 // pred_check
      _
    $region3: #{tpu_custom_call.1} parent=1 // pred_check_branch
      %17 = sbr.rel (0) target = $region5
    $region4: #{tpu_custom_call.1} parent=1 // pred_region
      %s18 = sld [smem:[#allocation5]]
      %s19 = sld [smem:[#allocation6]]
      %s20 = ssub.s32 %s19, 1
      %p21 = scmp.lt.s32.totalorder 0, %s20
      %s22 = scalar_select %p21, 0, %s20
      %s23 = sadd.s32 %s18, %s22
      %p24 = scmp.lt.s32.totalorder %s23, 0
      %s25 = scalar_select %p24, %s23, 0
      %s26 = scalar_lea.vmem %s2, %s25
      %s27 = sld [smem:[#allocation5]]
      %s28 = sld [smem:[#allocation6]]
      %s29 = ssub.s32 %s28, 1
      %p30 = scmp.lt.s32.totalorder 0, %s29
      %s31 = scalar_select %p30, 0, %s29
      %s32 = sadd.s32 %s27, %s31
    $region5: #{tpu_custom_call.1} parent=1 // pred_fallthru
      _
    // Predicated region
    $region6: #{tpu_custom_call.1} parent=1 // pred_check
      _
    $region7: #{tpu_custom_call.1} parent=1 // pred_check_branch
      %34 = sbr.rel (0) target = $region9
    $region8: #{tpu_custom_call.1} parent=1 // pred_region
      %s35 = sld [smem:[#allocation5]]
      %s36 = sld [smem:[#allocation6]]
      %s37 = ssub.s32 %s36, 1
      %p38 = scmp.lt.s32.totalorder 0, %s37
      %s39 = scalar_select %p38, 0, %s37
      %s40 = sadd.s32 %s35, %s39
      %p41 = scmp.lt.s32.totalorder %s40, 0
      %s42 = scalar_select %p41, %s40, 0
      %s43 = scalar_lea.vmem %s3, %s42
      %s44 = sld [smem:[#allocation5]]
      %s45 = sld [smem:[#allocation6]]
      %s46 = ssub.s32 %s45, 1
      %p47 = scmp.lt.s32.totalorder 0, %s46
      %s48 = scalar_select %p47, 0, %s46
      %s49 = sadd.s32 %s44, %s48
    $region9: #{tpu_custom_call.1} parent=1 // pred_fallthru
      _
    // Predicated region
    $region10: #{tpu_custom_call.1} parent=1 // pred_check
      _
    $region11: #{tpu_custom_call.1} parent=1 // pred_check_branch
      %51 = sbr.rel (0) target = $region13
    $region12: #{tpu_custom_call.1} parent=1 // pred_region
      %s52 = sld [smem:[#allocation5]]
      %s53 = sld [smem:[#allocation6]]
      %s54 = ssub.s32 %s53, 1
      %p55 = scmp.lt.s32.totalorder 0, %s54
      %s56 = scalar_select %p55, 0, %s54
      %s57 = sadd.s32 %s52, %s56
      %s58 = smul.u32 16, %s57
      %60 = vsyncadd [#allocation8], 0
      %s61 = smul.addr %s58, 2
      %s62 = smul.addr %s61, 4
      %s63 = scalar_lea.hbm %s4, %s62
      %s64 = sshll.u32 %s63, 4
      %s65 = int_to_ptr.hbm [resolvable:$true] %s64
      %s66 = sshll.u32 [#allocation7], 4
      %s67 = int_to_ptr.vmem [resolvable:$true] %s66
      %72 = dma.hbm_to_vmem [thread:$0]  %s65, 2048, %s67, [#allocation8], 128, 128, 8
    $region13: #{tpu_custom_call.1} parent=1 // pred_fallthru
      _
    // Predicated region
    $region14: #{tpu_custom_call.1} parent=1 // pred_check
      _
    $region15: #{tpu_custom_call.1} parent=1 // pred_check_branch
      %74 = sbr.rel (0) target = $region17
    $region16: #{tpu_custom_call.1} parent=1 // pred_region
      %76 = vsyncadd [#allocation11], 0
      %s77 = sshll.u32 %s5, 4
      %s78 = int_to_ptr.hbm [resolvable:$true] %s77
      %s79 = sshll.u32 [#allocation10], 4
      %s80 = int_to_ptr.vmem [resolvable:$true] %s79
      %85 = dma.hbm_to_vmem [thread:$0]  %s78, 2048, %s80, [#allocation11], 64, 64, 4
    $region17: #{tpu_custom_call.1} parent=1 // pred_fallthru
      _
    // Predicated region
    $region18: #{tpu_custom_call.1} parent=1 // pred_check
      _
    $region19: #{tpu_custom_call.1} parent=1 // pred_check_branch
      %87 = sbr.rel (0) target = $region21
    $region20: #{tpu_custom_call.1} parent=1 // pred_region
      %89 = dma.done [#allocation8], 2048
    $region21: #{tpu_custom_call.1} parent=1 // pred_fallthru
      _
    // Predicated region
    $region22: #{tpu_custom_call.1} parent=1 // pred_check
      _
    $region23: #{tpu_custom_call.1} parent=1 // pred_check_branch
      %91 = sbr.rel (0) target = $region25
    $region24: #{tpu_custom_call.1} parent=1 // pred_region
      %93 = dma.done [#allocation11], 2048
    $region25: #{tpu_custom_call.1} parent=1 // pred_fallthru
      _
    %s94 = sld [smem:[#allocation5]]
    %s95 = sld [smem:[#allocation6]]
    %s96 = ssub.s32 %s95, 1
    %p97 = scmp.lt.s32.totalorder 0, %s96
    %s98 = scalar_select %p97, 0, %s96
    %s99 = sadd.s32 %s94, %s98
    %p100 = scmp.lt.s32.totalorder %s99, 0
    %s101 = scalar_select %p100, %s99, 0
    %s102 = scalar_lea.vmem %s2, %s101
    %s103 = sld [smem:[#allocation5]]
    %s104 = sld [smem:[#allocation6]]
    %s105 = ssub.s32 %s104, 1
    %p106 = scmp.lt.s32.totalorder 0, %s105
    %s107 = scalar_select %p106, 0, %s105
    %s108 = sadd.s32 %s103, %s107
    %p109 = scmp.lt.s32.totalorder %s108, 0
    %s110 = scalar_select %p109, %s108, 0
    %s111 = scalar_lea.vmem %s3, %s110
    %s112 = sld [smem:[#allocation5]]
    %s113 = sld [smem:[#allocation6]]
    %s114 = ssub.s32 %s113, 1
    %p115 = scmp.lt.s32.totalorder 0, %s114
    %s116 = scalar_select %p115, 0, %s114
    %s117 = sadd.s32 %s112, %s116
    %p118 = scmp.lt.s32.totalorder %s117, 0
    %s119 = scalar_select %p118, %s117, 0
    %s120 = scalar_lea.vmem %s2, %s119
    %s121 = sld [smem:[#allocation5]]
    %s122 = sld [smem:[#allocation6]]
    %s123 = ssub.s32 %s122, 1
    %p124 = scmp.lt.s32.totalorder 0, %s123
    %s125 = scalar_select %p124, 0, %s123
    %s126 = sadd.s32 %s121, %s125
    %s127 = sld [smem:[#allocation5]]
    %s128 = sld [smem:[#allocation6]]
    %s129 = ssub.s32 %s128, 1
    %p130 = scmp.lt.s32.totalorder 0, %s129
    %s131 = scalar_select %p130, 0, %s129
    %s132 = sadd.s32 %s127, %s131
    %p133 = scmp.lt.s32.totalorder %s132, 0
    %s134 = scalar_select %p133, %s132, 0
    %s135 = scalar_lea.vmem %s3, %s134
    %s136 = sld [smem:[#allocation5]]
    %s137 = sld [smem:[#allocation6]]
    %s138 = ssub.s32 %s137, 1
    %p139 = scmp.lt.s32.totalorder 0, %s138
    %s140 = scalar_select %p139, 0, %s138
    %s141 = sadd.s32 %s136, %s140
    %s142 = sld [smem:[#allocation5]]
    %s143 = sld [smem:[#allocation6]]
    %s144 = ssub.s32 %s143, 1
    %p145 = scmp.lt.s32.totalorder 0, %s144
    %s146 = scalar_select %p145, 0, %s144
    %s147 = sadd.s32 %s142, %s146
    %s148 = smul.u32 16, %s147
    %p149 = scmp.eq.s32.totalorder 0, 0
    // Predicated region
    $region26: #{tpu_custom_call.1} parent=1 // pred_check
      %p150 = pneg %p149
    $region27: #{tpu_custom_call.1} parent=1 // pred_check_branch
      %152 = sbr.rel (%p150) target = $region29
    $region28: #{tpu_custom_call.1} parent=1 // pred_region
      %153 = vst [vmem:[#allocation12] sm:$0xff] 0.0
      %154 = vst [vmem:[#allocation12 + $0x8] sm:$0xff] 0.0
      %155 = vst [vmem:[#allocation12 + $0x10] sm:$0xff] 0.0
      %156 = vst [vmem:[#allocation12 + $0x18] sm:$0xff] 0.0
      %157 = vst [vmem:[#allocation12 + $0x20] sm:$0xff] 0.0
      %158 = vst [vmem:[#allocation12 + $0x28] sm:$0xff] 0.0
      %159 = vst [vmem:[#allocation12 + $0x30] sm:$0xff] 0.0
      %160 = vst [vmem:[#allocation12 + $0x38] sm:$0xff] 0.0
      %161 = vst [vmem:[#allocation12 + $0x40] sm:$0xff] 0.0
      %162 = vst [vmem:[#allocation12 + $0x48] sm:$0xff] 0.0
      %163 = vst [vmem:[#allocation12 + $0x50] sm:$0xff] 0.0
      %164 = vst [vmem:[#allocation12 + $0x58] sm:$0xff] 0.0
      %165 = vst [vmem:[#allocation12 + $0x60] sm:$0xff] 0.0
      %166 = vst [vmem:[#allocation12 + $0x68] sm:$0xff] 0.0
      %167 = vst [vmem:[#allocation12 + $0x70] sm:$0xff] 0.0
      %168 = vst [vmem:[#allocation12 + $0x78] sm:$0xff] 0.0
      %vm169 = vcmask 7168
      %170 = vst.msk [vmem:[#allocation2] sm:$0xff] %vm169, -1e+30
      %171 = vst.msk [vmem:[#allocation2 + $0x8] sm:$0xff] %vm169, -1e+30
      %172 = vst.msk [vmem:[#allocation2 + $0x10] sm:$0xff] %vm169, -1e+30
      %173 = vst.msk [vmem:[#allocation2 + $0x18] sm:$0xff] %vm169, -1e+30
      %174 = vst.msk [vmem:[#allocation2 + $0x20] sm:$0xff] %vm169, -1e+30
      %175 = vst.msk [vmem:[#allocation2 + $0x28] sm:$0xff] %vm169, -1e+30
      %176 = vst.msk [vmem:[#allocation2 + $0x30] sm:$0xff] %vm169, -1e+30
      %177 = vst.msk [vmem:[#allocation2 + $0x38] sm:$0xff] %vm169, -1e+30
      %178 = vst.msk [vmem:[#allocation2 + $0x40] sm:$0xff] %vm169, -1e+30
      %179 = vst.msk [vmem:[#allocation2 + $0x48] sm:$0xff] %vm169, -1e+30
      %180 = vst.msk [vmem:[#allocation2 + $0x50] sm:$0xff] %vm169, -1e+30
      %181 = vst.msk [vmem:[#allocation2 + $0x58] sm:$0xff] %vm169, -1e+30
      %182 = vst.msk [vmem:[#allocation2 + $0x60] sm:$0xff] %vm169, -1e+30
      %183 = vst.msk [vmem:[#allocation2 + $0x68] sm:$0xff] %vm169, -1e+30
      %184 = vst.msk [vmem:[#allocation2 + $0x70] sm:$0xff] %vm169, -1e+30
      %185 = vst.msk [vmem:[#allocation2 + $0x78] sm:$0xff] %vm169, -1e+30
      %186 = vst.msk [vmem:[#allocation3] sm:$0xff] %vm169, 0.0
      %187 = vst.msk [vmem:[#allocation3 + $0x8] sm:$0xff] %vm169, 0.0
      %188 = vst.msk [vmem:[#allocation3 + $0x10] sm:$0xff] %vm169, 0.0
      %189 = vst.msk [vmem:[#allocation3 + $0x18] sm:$0xff] %vm169, 0.0
      %190 = vst.msk [vmem:[#allocation3 + $0x20] sm:$0xff] %vm169, 0.0
      %191 = vst.msk [vmem:[#allocation3 + $0x28] sm:$0xff] %vm169, 0.0
      %192 = vst.msk [vmem:[#allocation3 + $0x30] sm:$0xff] %vm169, 0.0
      %193 = vst.msk [vmem:[#allocation3 + $0x38] sm:$0xff] %vm169, 0.0
      %194 = vst.msk [vmem:[#allocation3 + $0x40] sm:$0xff] %vm169, 0.0
      %195 = vst.msk [vmem:[#allocation3 + $0x48] sm:$0xff] %vm169, 0.0
      %196 = vst.msk [vmem:[#allocation3 + $0x50] sm:$0xff] %vm169, 0.0
      %197 = vst.msk [vmem:[#allocation3 + $0x58] sm:$0xff] %vm169, 0.0
      %198 = vst.msk [vmem:[#allocation3 + $0x60] sm:$0xff] %vm169, 0.0
      %199 = vst.msk [vmem:[#allocation3 + $0x68] sm:$0xff] %vm169, 0.0
      %200 = vst.msk [vmem:[#allocation3 + $0x70] sm:$0xff] %vm169, 0.0
      %201 = vst.msk [vmem:[#allocation3 + $0x78] sm:$0xff] %vm169, 0.0
    $region29: #{tpu_custom_call.1} parent=1 // pred_fallthru
      _
    %s202 = sld [smem:[#allocation6]]
    %p203 = scmp.lt.s32.totalorder 0, %s202
    // Predicated region
    $region30: #{tpu_custom_call.1} parent=1 // pred_check
      %p204 = pneg %p203
    $region31: #{tpu_custom_call.1} parent=1 // pred_check_branch
      %206 = sbr.rel (%p204) target = $region33
    $region32: #{tpu_custom_call.1} parent=1 // pred_region
      %v207 = vld [vmem:[%s120] sm:$0x1]
      %v208 = vld [vmem:[%s135] sm:$0x1]
      %s209 = smul.u32 0, 128
      %v210 = vlaneseq
      %v211 = vshrl.u32 %v210, 7
      %v212 = vadd.s32 %v211, 8
      %v213 = vadd.s32 %v211, 16
      %v214 = vadd.s32 %v211, 24
      %v215 = vadd.s32 %v211, 32
      %v216 = vadd.s32 %v211, 40
      %v217 = vadd.s32 %v211, 48
      %v218 = vadd.s32 %v211, 56
      %v219 = vadd.s32 %v211, 64
      %v220 = vadd.s32 %v211, 72
      %v221 = vadd.s32 %v211, 80
      %v222 = vadd.s32 %v211, 88
      %v223 = vadd.s32 %v211, 96
      %v224 = vadd.s32 %v211, 104
      %v225 = vadd.s32 %v211, 112
      %v226 = vadd.s32 %v211, 120
      %v227 = vstv %s209
      %v228 = vadd.s32 %v227, %v211
      %v229 = vadd.s32 %v227, %v212
      %v230 = vadd.s32 %v227, %v213
      %v231 = vadd.s32 %v227, %v214
      %v232 = vadd.s32 %v227, %v215
      %v233 = vadd.s32 %v227, %v216
      %v234 = vadd.s32 %v227, %v217
      %v235 = vadd.s32 %v227, %v218
      %v236 = vadd.s32 %v227, %v219
      %v237 = vadd.s32 %v227, %v220
      %v238 = vadd.s32 %v227, %v221
      %v239 = vadd.s32 %v227, %v222
      %v240 = vadd.s32 %v227, %v223
      %v241 = vadd.s32 %v227, %v224
      %v242 = vadd.s32 %v227, %v225
      %v243 = vadd.s32 %v227, %v226
      %v244 = vperm.slane %v207, 0
      %vm245 = vcmp.eq.s32.totalorder %v228, %v244
      %vm246 = vcmp.eq.s32.totalorder %v229, %v244
      %vm247 = vcmp.eq.s32.totalorder %v230, %v244
      %vm248 = vcmp.eq.s32.totalorder %v231, %v244
      %vm249 = vcmp.eq.s32.totalorder %v232, %v244
      %vm250 = vcmp.eq.s32.totalorder %v233, %v244
      %vm251 = vcmp.eq.s32.totalorder %v234, %v244
      %vm252 = vcmp.eq.s32.totalorder %v235, %v244
      %vm253 = vcmp.eq.s32.totalorder %v236, %v244
      %vm254 = vcmp.eq.s32.totalorder %v237, %v244
      %vm255 = vcmp.eq.s32.totalorder %v238, %v244
      %vm256 = vcmp.eq.s32.totalorder %v239, %v244
      %vm257 = vcmp.eq.s32.totalorder %v240, %v244
      %vm258 = vcmp.eq.s32.totalorder %v241, %v244
      %vm259 = vcmp.eq.s32.totalorder %v242, %v244
      %vm260 = vcmp.eq.s32.totalorder %v243, %v244
      %v262 = vperm.slane %v208, 0
      %v264 = vsel %vm245, %v262, -1e+30
      %v265 = vsel %vm246, %v262, -1e+30
      %v266 = vsel %vm247, %v262, -1e+30
      %v267 = vsel %vm248, %v262, -1e+30
      %v268 = vsel %vm249, %v262, -1e+30
      %v269 = vsel %vm250, %v262, -1e+30
      %v270 = vsel %vm251, %v262, -1e+30
      %v271 = vsel %vm252, %v262, -1e+30
      %v272 = vsel %vm253, %v262, -1e+30
      %v273 = vsel %vm254, %v262, -1e+30
      %v274 = vsel %vm255, %v262, -1e+30
      %v275 = vsel %vm256, %v262, -1e+30
      %v276 = vsel %vm257, %v262, -1e+30
      %v277 = vsel %vm258, %v262, -1e+30
      %v278 = vsel %vm259, %v262, -1e+30
      %v279 = vsel %vm260, %v262, -1e+30
      %280 = vmax.xlane.f32.xlu0 %v264
      %v281 = vpop.xlane.xlu0 %280
      %282 = vmax.xlane.f32.xlu0 %v265
      %v283 = vpop.xlane.xlu0 %282
      %284 = vmax.xlane.f32.xlu0 %v266
      %v285 = vpop.xlane.xlu0 %284
      %286 = vmax.xlane.f32.xlu0 %v267
      %v287 = vpop.xlane.xlu0 %286
      %288 = vmax.xlane.f32.xlu0 %v268
      %v289 = vpop.xlane.xlu0 %288
      %290 = vmax.xlane.f32.xlu0 %v269
      %v291 = vpop.xlane.xlu0 %290
      %292 = vmax.xlane.f32.xlu0 %v270
      %v293 = vpop.xlane.xlu0 %292
      %294 = vmax.xlane.f32.xlu0 %v271
      %v295 = vpop.xlane.xlu0 %294
      %296 = vmax.xlane.f32.xlu0 %v272
      %v297 = vpop.xlane.xlu0 %296
      %298 = vmax.xlane.f32.xlu0 %v273
      %v299 = vpop.xlane.xlu0 %298
      %300 = vmax.xlane.f32.xlu0 %v274
      %v301 = vpop.xlane.xlu0 %300
      %302 = vmax.xlane.f32.xlu0 %v275
      %v303 = vpop.xlane.xlu0 %302
      %304 = vmax.xlane.f32.xlu0 %v276
      %v305 = vpop.xlane.xlu0 %304
      %306 = vmax.xlane.f32.xlu0 %v277
      %v307 = vpop.xlane.xlu0 %306
      %308 = vmax.xlane.f32.xlu0 %v278
      %v309 = vpop.xlane.xlu0 %308
      %310 = vmax.xlane.f32.xlu0 %v279
      %v311 = vpop.xlane.xlu0 %310
      %v312 = vld [vmem:[#allocation2] sm:$0xff]
      %v313 = vld [vmem:[#allocation2 + $0x8] sm:$0xff]
      %v314 = vld [vmem:[#allocation2 + $0x10] sm:$0xff]
      %v315 = vld [vmem:[#allocation2 + $0x18] sm:$0xff]
      %v316 = vld [vmem:[#allocation2 + $0x20] sm:$0xff]
      %v317 = vld [vmem:[#allocation2 + $0x28] sm:$0xff]
      %v318 = vld [vmem:[#allocation2 + $0x30] sm:$0xff]
      %v319 = vld [vmem:[#allocation2 + $0x38] sm:$0xff]
      %v320 = vld [vmem:[#allocation2 + $0x40] sm:$0xff]
      %v321 = vld [vmem:[#allocation2 + $0x48] sm:$0xff]
      %v322 = vld [vmem:[#allocation2 + $0x50] sm:$0xff]
      %v323 = vld [vmem:[#allocation2 + $0x58] sm:$0xff]
      %v324 = vld [vmem:[#allocation2 + $0x60] sm:$0xff]
      %v325 = vld [vmem:[#allocation2 + $0x68] sm:$0xff]
      %v326 = vld [vmem:[#allocation2 + $0x70] sm:$0xff]
      %v327 = vld [vmem:[#allocation2 + $0x78] sm:$0xff]
      %v328 = vmax.f32 %v312, %v281
      %v329 = vmax.f32 %v313, %v283
      %v330 = vmax.f32 %v314, %v285
      %v331 = vmax.f32 %v315, %v287
      %v332 = vmax.f32 %v316, %v289
      %v333 = vmax.f32 %v317, %v291
      %v334 = vmax.f32 %v318, %v293
      %v335 = vmax.f32 %v319, %v295
      %v336 = vmax.f32 %v320, %v297
      %v337 = vmax.f32 %v321, %v299
      %v338 = vmax.f32 %v322, %v301
      %v339 = vmax.f32 %v323, %v303
      %v340 = vmax.f32 %v324, %v305
      %v341 = vmax.f32 %v325, %v307
      %v342 = vmax.f32 %v326, %v309
      %v343 = vmax.f32 %v327, %v311
      %v344 = vsub.f32 %v312, %v328
      %v345 = vsub.f32 %v313, %v329
      %v346 = vsub.f32 %v314, %v330
      %v347 = vsub.f32 %v315, %v331
      %v348 = vsub.f32 %v316, %v332
      %v349 = vsub.f32 %v317, %v333
      %v350 = vsub.f32 %v318, %v334
      %v351 = vsub.f32 %v319, %v335
      %v352 = vsub.f32 %v320, %v336
      %v353 = vsub.f32 %v321, %v337
      %v354 = vsub.f32 %v322, %v338
      %v355 = vsub.f32 %v323, %v339
      %v356 = vsub.f32 %v324, %v340
      %v357 = vsub.f32 %v325, %v341
      %v358 = vsub.f32 %v326, %v342
      %v359 = vsub.f32 %v327, %v343
      %v360 = vmul.f32 %v344, 1.442695
      %v361 = vpow.pop %v360
      %v362 = vmul.f32 %v345, 1.442695
      %v363 = vpow.pop %v362
      %v364 = vmul.f32 %v346, 1.442695
      %v365 = vpow.pop %v364
      %v366 = vmul.f32 %v347, 1.442695
      %v367 = vpow.pop %v366
      %v368 = vmul.f32 %v348, 1.442695
      %v369 = vpow.pop %v368
      %v370 = vmul.f32 %v349, 1.442695
      %v371 = vpow.pop %v370
      %v372 = vmul.f32 %v350, 1.442695
      %v373 = vpow.pop %v372
      %v374 = vmul.f32 %v351, 1.442695
      %v375 = vpow.pop %v374
      %v376 = vmul.f32 %v352, 1.442695
      %v377 = vpow.pop %v376
      %v378 = vmul.f32 %v353, 1.442695
      %v379 = vpow.pop %v378
      %v380 = vmul.f32 %v354, 1.442695
      %v381 = vpow.pop %v380
      %v382 = vmul.f32 %v355, 1.442695
      %v383 = vpow.pop %v382
      %v384 = vmul.f32 %v356, 1.442695
      %v385 = vpow.pop %v384
      %v386 = vmul.f32 %v357, 1.442695
      %v387 = vpow.pop %v386
      %v388 = vmul.f32 %v358, 1.442695
      %v389 = vpow.pop %v388
      %v390 = vmul.f32 %v359, 1.442695
      %v391 = vpow.pop %v390
      %393 = vset.pattern.permute.xlu0 0
      %394 = vperm.xlu0 %393, %v328
      %v395 = vpop.permute.xlu0 %394
      %398 = vset.pattern.permute.xlu0 0
      %399 = vperm.xlu0 %398, %v329
      %v400 = vpop.permute.xlu0 %399
      %403 = vset.pattern.permute.xlu0 0
      %404 = vperm.xlu0 %403, %v330
      %v405 = vpop.permute.xlu0 %404
      %408 = vset.pattern.permute.xlu0 0
      %409 = vperm.xlu0 %408, %v331
      %v410 = vpop.permute.xlu0 %409
      %413 = vset.pattern.permute.xlu0 0
      %414 = vperm.xlu0 %413, %v332
      %v415 = vpop.permute.xlu0 %414
      %418 = vset.pattern.permute.xlu0 0
      %419 = vperm.xlu0 %418, %v333
      %v420 = vpop.permute.xlu0 %419
      %423 = vset.pattern.permute.xlu0 0
      %424 = vperm.xlu0 %423, %v334
      %v425 = vpop.permute.xlu0 %424
      %428 = vset.pattern.permute.xlu0 0
      %429 = vperm.xlu0 %428, %v335
      %v430 = vpop.permute.xlu0 %429
      %433 = vset.pattern.permute.xlu0 0
      %434 = vperm.xlu0 %433, %v336
      %v435 = vpop.permute.xlu0 %434
      %438 = vset.pattern.permute.xlu0 0
      %439 = vperm.xlu0 %438, %v337
      %v440 = vpop.permute.xlu0 %439
      %443 = vset.pattern.permute.xlu0 0
      %444 = vperm.xlu0 %443, %v338
      %v445 = vpop.permute.xlu0 %444
      %448 = vset.pattern.permute.xlu0 0
      %449 = vperm.xlu0 %448, %v339
      %v450 = vpop.permute.xlu0 %449
      %453 = vset.pattern.permute.xlu0 0
      %454 = vperm.xlu0 %453, %v340
      %v455 = vpop.permute.xlu0 %454
      %458 = vset.pattern.permute.xlu0 0
      %459 = vperm.xlu0 %458, %v341
      %v460 = vpop.permute.xlu0 %459
      %463 = vset.pattern.permute.xlu0 0
      %464 = vperm.xlu0 %463, %v342
      %v465 = vpop.permute.xlu0 %464
      %468 = vset.pattern.permute.xlu0 0
      %469 = vperm.xlu0 %468, %v343
      %v470 = vpop.permute.xlu0 %469
      %v472 = vsub.f32 %v262, %v395
      %v473 = vsub.f32 %v262, %v400
      %v474 = vsub.f32 %v262, %v405
      %v475 = vsub.f32 %v262, %v410
      %v476 = vsub.f32 %v262, %v415
      %v477 = vsub.f32 %v262, %v420
      %v478 = vsub.f32 %v262, %v425
      %v479 = vsub.f32 %v262, %v430
      %v480 = vsub.f32 %v262, %v435
      %v481 = vsub.f32 %v262, %v440
      %v482 = vsub.f32 %v262, %v445
      %v483 = vsub.f32 %v262, %v450
      %v484 = vsub.f32 %v262, %v455
      %v485 = vsub.f32 %v262, %v460
      %v486 = vsub.f32 %v262, %v465
      %v487 = vsub.f32 %v262, %v470
      %v488 = vsel %vm245, %v472, -1e+30
      %v489 = vsel %vm246, %v473, -1e+30
      %v490 = vsel %vm247, %v474, -1e+30
      %v491 = vsel %vm248, %v475, -1e+30
      %v492 = vsel %vm249, %v476, -1e+30
      %v493 = vsel %vm250, %v477, -1e+30
      %v494 = vsel %vm251, %v478, -1e+30
      %v495 = vsel %vm252, %v479, -1e+30
      %v496 = vsel %vm253, %v480, -1e+30
      %v497 = vsel %vm254, %v481, -1e+30
      %v498 = vsel %vm255, %v482, -1e+30
      %v499 = vsel %vm256, %v483, -1e+30
      %v500 = vsel %vm257, %v484, -1e+30
      %v501 = vsel %vm258, %v485, -1e+30
      %v502 = vsel %vm259, %v486, -1e+30
      %v503 = vsel %vm260, %v487, -1e+30
      %v504 = vmul.f32 %v488, 1.442695
      %v505 = vpow.pop %v504
      %v506 = vmul.f32 %v489, 1.442695
      %v507 = vpow.pop %v506
      %v508 = vmul.f32 %v490, 1.442695
      %v509 = vpow.pop %v508
      %v510 = vmul.f32 %v491, 1.442695
      %v511 = vpow.pop %v510
      %v512 = vmul.f32 %v492, 1.442695
      %v513 = vpow.pop %v512
      %v514 = vmul.f32 %v493, 1.442695
      %v515 = vpow.pop %v514
      %v516 = vmul.f32 %v494, 1.442695
      %v517 = vpow.pop %v516
      %v518 = vmul.f32 %v495, 1.442695
      %v519 = vpow.pop %v518
      %v520 = vmul.f32 %v496, 1.442695
      %v521 = vpow.pop %v520
      %v522 = vmul.f32 %v497, 1.442695
      %v523 = vpow.pop %v522
      %v524 = vmul.f32 %v498, 1.442695
      %v525 = vpow.pop %v524
      %v526 = vmul.f32 %v499, 1.442695
      %v527 = vpow.pop %v526
      %v528 = vmul.f32 %v500, 1.442695
      %v529 = vpow.pop %v528
      %v530 = vmul.f32 %v501, 1.442695
      %v531 = vpow.pop %v530
      %v532 = vmul.f32 %v502, 1.442695
      %v533 = vpow.pop %v532
      %v534 = vmul.f32 %v503, 1.442695
      %v535 = vpow.pop %v534
      %v536 = vld [vmem:[#allocation3] sm:$0xff]
      %v537 = vld [vmem:[#allocation3 + $0x8] sm:$0xff]
      %v538 = vld [vmem:[#allocation3 + $0x10] sm:$0xff]
      %v539 = vld [vmem:[#allocation3 + $0x18] sm:$0xff]
      %v540 = vld [vmem:[#allocation3 + $0x20] sm:$0xff]
      %v541 = vld [vmem:[#allocation3 + $0x28] sm:$0xff]
      %v542 = vld [vmem:[#allocation3 + $0x30] sm:$0xff]
      %v543 = vld [vmem:[#allocation3 + $0x38] sm:$0xff]
      %v544 = vld [vmem:[#allocation3 + $0x40] sm:$0xff]
      %v545 = vld [vmem:[#allocation3 + $0x48] sm:$0xff]
      %v546 = vld [vmem:[#allocation3 + $0x50] sm:$0xff]
      %v547 = vld [vmem:[#allocation3 + $0x58] sm:$0xff]
      %v548 = vld [vmem:[#allocation3 + $0x60] sm:$0xff]
      %v549 = vld [vmem:[#allocation3 + $0x68] sm:$0xff]
      %v550 = vld [vmem:[#allocation3 + $0x70] sm:$0xff]
      %v551 = vld [vmem:[#allocation3 + $0x78] sm:$0xff]
      %v552 = vmul.f32 %v361, %v536
      %v553 = vmul.f32 %v363, %v537
      %v554 = vmul.f32 %v365, %v538
      %v555 = vmul.f32 %v367, %v539
      %v556 = vmul.f32 %v369, %v540
      %v557 = vmul.f32 %v371, %v541
      %v558 = vmul.f32 %v373, %v542
      %v559 = vmul.f32 %v375, %v543
      %v560 = vmul.f32 %v377, %v544
      %v561 = vmul.f32 %v379, %v545
      %v562 = vmul.f32 %v381, %v546
      %v563 = vmul.f32 %v383, %v547
      %v564 = vmul.f32 %v385, %v548
      %v565 = vmul.f32 %v387, %v549
      %v566 = vmul.f32 %v389, %v550
      %v567 = vmul.f32 %v391, %v551
      %568 = vadd.xlane.f32.xlu0 %v505
      %v569 = vpop.xlane.xlu0 %568
      %570 = vadd.xlane.f32.xlu0 %v507
      %v571 = vpop.xlane.xlu0 %570
      %572 = vadd.xlane.f32.xlu0 %v509
      %v573 = vpop.xlane.xlu0 %572
      %574 = vadd.xlane.f32.xlu0 %v511
      %v575 = vpop.xlane.xlu0 %574
      %576 = vadd.xlane.f32.xlu0 %v513
      %v577 = vpop.xlane.xlu0 %576
      %578 = vadd.xlane.f32.xlu0 %v515
      %v579 = vpop.xlane.xlu0 %578
      %580 = vadd.xlane.f32.xlu0 %v517
      %v581 = vpop.xlane.xlu0 %580
      %582 = vadd.xlane.f32.xlu0 %v519
      %v583 = vpop.xlane.xlu0 %582
      %584 = vadd.xlane.f32.xlu0 %v521
      %v585 = vpop.xlane.xlu0 %584
      %586 = vadd.xlane.f32.xlu0 %v523
      %v587 = vpop.xlane.xlu0 %586
      %588 = vadd.xlane.f32.xlu0 %v525
      %v589 = vpop.xlane.xlu0 %588
      %590 = vadd.xlane.f32.xlu0 %v527
      %v591 = vpop.xlane.xlu0 %590
      %592 = vadd.xlane.f32.xlu0 %v529
      %v593 = vpop.xlane.xlu0 %592
      %594 = vadd.xlane.f32.xlu0 %v531
      %v595 = vpop.xlane.xlu0 %594
      %596 = vadd.xlane.f32.xlu0 %v533
      %v597 = vpop.xlane.xlu0 %596
      %598 = vadd.xlane.f32.xlu0 %v535
      %v599 = vpop.xlane.xlu0 %598
      %v600 = vadd.f32 %v552, %v569
      %v601 = vadd.f32 %v553, %v571
      %v602 = vadd.f32 %v554, %v573
      %v603 = vadd.f32 %v555, %v575
      %v604 = vadd.f32 %v556, %v577
      %v605 = vadd.f32 %v557, %v579
      %v606 = vadd.f32 %v558, %v581
      %v607 = vadd.f32 %v559, %v583
      %v608 = vadd.f32 %v560, %v585
      %v609 = vadd.f32 %v561, %v587
      %v610 = vadd.f32 %v562, %v589
      %v611 = vadd.f32 %v563, %v591
      %v612 = vadd.f32 %v564, %v593
      %v613 = vadd.f32 %v565, %v595
      %v614 = vadd.f32 %v566, %v597
      %v615 = vadd.f32 %v567, %v599
      %vm616 = vcmask 7168
      %617 = vst.msk [vmem:[#allocation3] sm:$0xff] %vm616, %v600
      %618 = vst.msk [vmem:[#allocation3 + $0x8] sm:$0xff] %vm616, %v601
      %619 = vst.msk [vmem:[#allocation3 + $0x10] sm:$0xff] %vm616, %v602
      %620 = vst.msk [vmem:[#allocation3 + $0x18] sm:$0xff] %vm616, %v603
      %621 = vst.msk [vmem:[#allocation3 + $0x20] sm:$0xff] %vm616, %v604
      %622 = vst.msk [vmem:[#allocation3 + $0x28] sm:$0xff] %vm616, %v605
      %623 = vst.msk [vmem:[#allocation3 + $0x30] sm:$0xff] %vm616, %v606
      %624 = vst.msk [vmem:[#allocation3 + $0x38] sm:$0xff] %vm616, %v607
      %625 = vst.msk [vmem:[#allocation3 + $0x40] sm:$0xff] %vm616, %v608
      %626 = vst.msk [vmem:[#allocation3 + $0x48] sm:$0xff] %vm616, %v609
      %627 = vst.msk [vmem:[#allocation3 + $0x50] sm:$0xff] %vm616, %v610
      %628 = vst.msk [vmem:[#allocation3 + $0x58] sm:$0xff] %vm616, %v611
      %629 = vst.msk [vmem:[#allocation3 + $0x60] sm:$0xff] %vm616, %v612
      %630 = vst.msk [vmem:[#allocation3 + $0x68] sm:$0xff] %vm616, %v613
      %631 = vst.msk [vmem:[#allocation3 + $0x70] sm:$0xff] %vm616, %v614
      %632 = vst.msk [vmem:[#allocation3 + $0x78] sm:$0xff] %vm616, %v615
      %633 = vst.msk [vmem:[#allocation2] sm:$0xff] %vm616, %v328
      %634 = vst.msk [vmem:[#allocation2 + $0x8] sm:$0xff] %vm616, %v329
      %635 = vst.msk [vmem:[#allocation2 + $0x10] sm:$0xff] %vm616, %v330
      %636 = vst.msk [vmem:[#allocation2 + $0x18] sm:$0xff] %vm616, %v331
      %637 = vst.msk [vmem:[#allocation2 + $0x20] sm:$0xff] %vm616, %v332
      %638 = vst.msk [vmem:[#allocation2 + $0x28] sm:$0xff] %vm616, %v333
      %639 = vst.msk [vmem:[#allocation2 + $0x30] sm:$0xff] %vm616, %v334
      %640 = vst.msk [vmem:[#allocation2 + $0x38] sm:$0xff] %vm616, %v335
      %641 = vst.msk [vmem:[#allocation2 + $0x40] sm:$0xff] %vm616, %v336
      %642 = vst.msk [vmem:[#allocation2 + $0x48] sm:$0xff] %vm616, %v337
      %643 = vst.msk [vmem:[#allocation2 + $0x50] sm:$0xff] %vm616, %v338
      %644 = vst.msk [vmem:[#allocation2 + $0x58] sm:$0xff] %vm616, %v339
      %645 = vst.msk [vmem:[#allocation2 + $0x60] sm:$0xff] %vm616, %v340
      %646 = vst.msk [vmem:[#allocation2 + $0x68] sm:$0xff] %vm616, %v341
      %647 = vst.msk [vmem:[#allocation2 + $0x70] sm:$0xff] %vm616, %v342
      %648 = vst.msk [vmem:[#allocation2 + $0x78] sm:$0xff] %vm616, %v343
      %v649 = vld [vmem:[#allocation7] sm:$0xff]
      %v650 = vld [vmem:[#allocation7 + $0x8] sm:$0xff]
      %v651 = vld [vmem:[#allocation7 + $0x10] sm:$0xff]
      %v652 = vld [vmem:[#allocation7 + $0x18] sm:$0xff]
      %v653 = vld [vmem:[#allocation7 + $0x20] sm:$0xff]
      %v654 = vld [vmem:[#allocation7 + $0x28] sm:$0xff]
      %v655 = vld [vmem:[#allocation7 + $0x30] sm:$0xff]
      %v656 = vld [vmem:[#allocation7 + $0x38] sm:$0xff]
      %v657 = vld [vmem:[#allocation7 + $0x40] sm:$0xff]
      %v658 = vld [vmem:[#allocation7 + $0x48] sm:$0xff]
      %v659 = vld [vmem:[#allocation7 + $0x50] sm:$0xff]
      %v660 = vld [vmem:[#allocation7 + $0x58] sm:$0xff]
      %v661 = vld [vmem:[#allocation7 + $0x60] sm:$0xff]
      %v662 = vld [vmem:[#allocation7 + $0x68] sm:$0xff]
      %v663 = vld [vmem:[#allocation7 + $0x70] sm:$0xff]
      %v664 = vld [vmem:[#allocation7 + $0x78] sm:$0xff]
      %v665 = vld [vmem:[#allocation10] sm:$0xf]
      %v666 = vld [vmem:[#allocation10 + $0x4] sm:$0xf]
      %v667 = vld [vmem:[#allocation10 + $0x8] sm:$0xf]
      %v668 = vld [vmem:[#allocation10 + $0xc] sm:$0xf]
      %v669 = vld [vmem:[#allocation10 + $0x10] sm:$0xf]
      %v670 = vld [vmem:[#allocation10 + $0x14] sm:$0xf]
      %v671 = vld [vmem:[#allocation10 + $0x18] sm:$0xf]
      %v672 = vld [vmem:[#allocation10 + $0x1c] sm:$0xf]
      %v673 = vld [vmem:[#allocation10 + $0x20] sm:$0xf]
      %v674 = vld [vmem:[#allocation10 + $0x24] sm:$0xf]
      %v675 = vld [vmem:[#allocation10 + $0x28] sm:$0xf]
      %v676 = vld [vmem:[#allocation10 + $0x2c] sm:$0xf]
      %v677 = vld [vmem:[#allocation10 + $0x30] sm:$0xf]
      %v678 = vld [vmem:[#allocation10 + $0x34] sm:$0xf]
      %v679 = vld [vmem:[#allocation10 + $0x38] sm:$0xf]
      %v680 = vld [vmem:[#allocation10 + $0x3c] sm:$0xf]
      %v681 = vld [vmem:[#allocation10 + $0x40] sm:$0xf]
      %v682 = vld [vmem:[#allocation10 + $0x44] sm:$0xf]
      %v683 = vld [vmem:[#allocation10 + $0x48] sm:$0xf]
      %v684 = vld [vmem:[#allocation10 + $0x4c] sm:$0xf]
      %v685 = vld [vmem:[#allocation10 + $0x50] sm:$0xf]
      %v686 = vld [vmem:[#allocation10 + $0x54] sm:$0xf]
      %v687 = vld [vmem:[#allocation10 + $0x58] sm:$0xf]
      %v688 = vld [vmem:[#allocation10 + $0x5c] sm:$0xf]
      %v689 = vld [vmem:[#allocation10 + $0x60] sm:$0xf]
      %v690 = vld [vmem:[#allocation10 + $0x64] sm:$0xf]
      %v691 = vld [vmem:[#allocation10 + $0x68] sm:$0xf]
      %v692 = vld [vmem:[#allocation10 + $0x6c] sm:$0xf]
      %v693 = vld [vmem:[#allocation10 + $0x70] sm:$0xf]
      %v694 = vld [vmem:[#allocation10 + $0x74] sm:$0xf]
      %v695 = vld [vmem:[#allocation10 + $0x78] sm:$0xf]
      %v696 = vld [vmem:[#allocation10 + $0x7c] sm:$0xf]
      %v713 = vunpack.c.l.b16 %v649
      %v714 = vunpack.c.h.b16 %v649
      %v715 = vunpack.c.l.b16 %v650
      %v716 = vunpack.c.h.b16 %v650
      %v717 = vunpack.c.l.b16 %v651
      %v718 = vunpack.c.h.b16 %v651
      %v719 = vunpack.c.l.b16 %v652
      %v720 = vunpack.c.h.b16 %v652
      %v721 = vunpack.c.l.b16 %v653
      %v722 = vunpack.c.h.b16 %v653
      %v723 = vunpack.c.l.b16 %v654
      %v724 = vunpack.c.h.b16 %v654
      %v725 = vunpack.c.l.b16 %v655
      %v726 = vunpack.c.h.b16 %v655
      %v727 = vunpack.c.l.b16 %v656
      %v728 = vunpack.c.h.b16 %v656
      %v729 = vunpack.c.l.b16 %v657
      %v730 = vunpack.c.h.b16 %v657
      %v731 = vunpack.c.l.b16 %v658
      %v732 = vunpack.c.h.b16 %v658
      %v733 = vunpack.c.l.b16 %v659
      %v734 = vunpack.c.h.b16 %v659
      %v735 = vunpack.c.l.b16 %v660
      %v736 = vunpack.c.h.b16 %v660
      %v737 = vunpack.c.l.b16 %v661
      %v738 = vunpack.c.h.b16 %v661
      %v739 = vunpack.c.l.b16 %v662
      %v740 = vunpack.c.h.b16 %v662
      %v741 = vunpack.c.l.b16 %v663
      %v742 = vunpack.c.h.b16 %v663
      %v743 = vunpack.c.l.b16 %v664
      %v744 = vunpack.c.h.b16 %v664
      %v745 = vpack.c.b16 %v715, %v713
      %v746 = vpack.c.b16 %v716, %v714
      %v747 = vpack.c.b16 %v719, %v717
      %v748 = vpack.c.b16 %v720, %v718
      %v749 = vpack.c.b16 %v723, %v721
      %v750 = vpack.c.b16 %v724, %v722
      %v751 = vpack.c.b16 %v727, %v725
      %v752 = vpack.c.b16 %v728, %v726
      %v753 = vpack.c.b16 %v731, %v729
      %v754 = vpack.c.b16 %v732, %v730
      %v755 = vpack.c.b16 %v735, %v733
      %v756 = vpack.c.b16 %v736, %v734
      %v757 = vpack.c.b16 %v739, %v737
      %v758 = vpack.c.b16 %v740, %v738
      %v759 = vpack.c.b16 %v743, %v741
      %v760 = vpack.c.b16 %v744, %v742
      %v809 = vunpack.c.l.b16 %v665
      %v810 = vunpack.c.l.b16 %v666
      %v811 = vunpack.c.l.b16 %v667
      %v812 = vunpack.c.l.b16 %v668
      %v813 = vunpack.c.l.b16 %v669
      %v814 = vunpack.c.l.b16 %v670
      %v815 = vunpack.c.l.b16 %v671
      %v816 = vunpack.c.l.b16 %v672
      %v817 = vunpack.c.l.b16 %v673
      %v818 = vunpack.c.l.b16 %v674
      %v819 = vunpack.c.l.b16 %v675
      %v820 = vunpack.c.l.b16 %v676
      %v821 = vunpack.c.l.b16 %v677
      %v822 = vunpack.c.l.b16 %v678
      %v823 = vunpack.c.l.b16 %v679
      %v824 = vunpack.c.l.b16 %v680
      %v825 = vunpack.c.l.b16 %v681
      %v826 = vunpack.c.l.b16 %v682
      %v827 = vunpack.c.l.b16 %v683
      %v828 = vunpack.c.l.b16 %v684
      %v829 = vunpack.c.l.b16 %v685
      %v830 = vunpack.c.l.b16 %v686
      %v831 = vunpack.c.l.b16 %v687
      %v832 = vunpack.c.l.b16 %v688
      %v833 = vunpack.c.l.b16 %v689
      %v834 = vunpack.c.l.b16 %v690
      %v835 = vunpack.c.l.b16 %v691
      %v836 = vunpack.c.l.b16 %v692
      %v837 = vunpack.c.l.b16 %v693
      %v838 = vunpack.c.l.b16 %v694
      %v839 = vunpack.c.l.b16 %v695
      %v840 = vunpack.c.l.b16 %v696
      %v841 = vpack.c.b16 %v810, %v809
      %v842 = vpack.c.b16 %v812, %v811
      %v843 = vpack.c.b16 %v814, %v813
      %v844 = vpack.c.b16 %v816, %v815
      %v845 = vpack.c.b16 %v818, %v817
      %v846 = vpack.c.b16 %v820, %v819
      %v847 = vpack.c.b16 %v822, %v821
      %v848 = vpack.c.b16 %v824, %v823
      %v849 = vpack.c.b16 %v826, %v825
      %v850 = vpack.c.b16 %v828, %v827
      %v851 = vpack.c.b16 %v830, %v829
      %v852 = vpack.c.b16 %v832, %v831
      %v853 = vpack.c.b16 %v834, %v833
      %v854 = vpack.c.b16 %v836, %v835
      %v855 = vpack.c.b16 %v838, %v837
      %v856 = vpack.c.b16 %v840, %v839
      %873 = vmatpush.bf16.msra.mxu0 %v848
      %874 = vmatpush.bf16.msra.mxu0 %v847
      %875 = vmatpush.bf16.msra.mxu0 %v846
      %876 = vmatpush.bf16.msra.mxu0 %v845
      %877 = vmatpush.bf16.msra.mxu0 %v844
      %878 = vmatpush.bf16.msra.mxu0 %v843
      %879 = vmatpush.bf16.msra.mxu0 %v842
      %880 = vmatpush.bf16.msra.mxu0 %v841
      %881 = vmatmul.bf16.gmra.mxu0 %v745
      %v882 = vpop.f32.mrf.mxu0
      %v883 = vadd.f32 0.0, %v882
      %v884 = vpop.f32.mrf.mxu0
      %v885 = vadd.f32 0.0, %v884
      %886 = vmatmul.bf16.gmra.mxu0 %v747
      %v887 = vpop.f32.mrf.mxu0
      %v888 = vadd.f32 0.0, %v887
      %v889 = vpop.f32.mrf.mxu0
      %v890 = vadd.f32 0.0, %v889
      %891 = vmatmul.bf16.gmra.mxu0 %v749
      %v892 = vpop.f32.mrf.mxu0
      %v893 = vadd.f32 0.0, %v892
      %v894 = vpop.f32.mrf.mxu0
      %v895 = vadd.f32 0.0, %v894
      %896 = vmatmul.bf16.gmra.mxu0 %v751
      %v897 = vpop.f32.mrf.mxu0
      %v898 = vadd.f32 0.0, %v897
      %v899 = vpop.f32.mrf.mxu0
      %v900 = vadd.f32 0.0, %v899
      %901 = vmatmul.bf16.gmra.mxu0 %v753
      %v902 = vpop.f32.mrf.mxu0
      %v903 = vadd.f32 0.0, %v902
      %v904 = vpop.f32.mrf.mxu0
      %v905 = vadd.f32 0.0, %v904
      %906 = vmatmul.bf16.gmra.mxu0 %v755
      %v907 = vpop.f32.mrf.mxu0
      %v908 = vadd.f32 0.0, %v907
      %v909 = vpop.f32.mrf.mxu0
      %v910 = vadd.f32 0.0, %v909
      %911 = vmatmul.bf16.gmra.mxu0 %v757
      %v912 = vpop.f32.mrf.mxu0
      %v913 = vadd.f32 0.0, %v912
      %v914 = vpop.f32.mrf.mxu0
      %v915 = vadd.f32 0.0, %v914
      %916 = vmatmul.bf16.gmra.mxu0 %v759
      %v917 = vpop.f32.mrf.mxu0
      %v918 = vadd.f32 0.0, %v917
      %v919 = vpop.f32.mrf.mxu0
      %v920 = vadd.f32 0.0, %v919
      %921 = vdwg.mxu0
      %922 = vmatpush.bf16.msra.mxu0 %v856
      %923 = vmatpush.bf16.msra.mxu0 %v855
      %924 = vmatpush.bf16.msra.mxu0 %v854
      %925 = vmatpush.bf16.msra.mxu0 %v853
      %926 = vmatpush.bf16.msra.mxu0 %v852
      %927 = vmatpush.bf16.msra.mxu0 %v851
      %928 = vmatpush.bf16.msra.mxu0 %v850
      %929 = vmatpush.bf16.msra.mxu0 %v849
      %930 = vmatmul.bf16.gmra.mxu0 %v746
      %v931 = vpop.f32.mrf.mxu0
      %v932 = vadd.f32 %v883, %v931
      %v933 = vpop.f32.mrf.mxu0
      %v934 = vadd.f32 %v885, %v933
      %935 = vmatmul.bf16.gmra.mxu0 %v748
      %v936 = vpop.f32.mrf.mxu0
      %v937 = vadd.f32 %v888, %v936
      %v938 = vpop.f32.mrf.mxu0
      %v939 = vadd.f32 %v890, %v938
      %940 = vmatmul.bf16.gmra.mxu0 %v750
      %v941 = vpop.f32.mrf.mxu0
      %v942 = vadd.f32 %v893, %v941
      %v943 = vpop.f32.mrf.mxu0
      %v944 = vadd.f32 %v895, %v943
      %945 = vmatmul.bf16.gmra.mxu0 %v752
      %v946 = vpop.f32.mrf.mxu0
      %v947 = vadd.f32 %v898, %v946
      %v948 = vpop.f32.mrf.mxu0
      %v949 = vadd.f32 %v900, %v948
      %950 = vmatmul.bf16.gmra.mxu0 %v754
      %v951 = vpop.f32.mrf.mxu0
      %v952 = vadd.f32 %v903, %v951
      %v953 = vpop.f32.mrf.mxu0
      %v954 = vadd.f32 %v905, %v953
      %955 = vmatmul.bf16.gmra.mxu0 %v756
      %v956 = vpop.f32.mrf.mxu0
      %v957 = vadd.f32 %v908, %v956
      %v958 = vpop.f32.mrf.mxu0
      %v959 = vadd.f32 %v910, %v958
      %960 = vmatmul.bf16.gmra.mxu0 %v758
      %v961 = vpop.f32.mrf.mxu0
      %v962 = vadd.f32 %v913, %v961
      %v963 = vpop.f32.mrf.mxu0
      %v964 = vadd.f32 %v915, %v963
      %965 = vmatmul.bf16.gmra.mxu0 %v760
      %v966 = vpop.f32.mrf.mxu0
      %v967 = vadd.f32 %v918, %v966
      %v968 = vpop.f32.mrf.mxu0
      %v969 = vadd.f32 %v920, %v968
      %970 = vdwg.mxu0
      %v971 = vld [vmem:[#allocation12] sm:$0xff]
      %v972 = vld [vmem:[#allocation12 + $0x8] sm:$0xff]
      %v973 = vld [vmem:[#allocation12 + $0x10] sm:$0xff]
      %v974 = vld [vmem:[#allocation12 + $0x18] sm:$0xff]
      %v975 = vld [vmem:[#allocation12 + $0x20] sm:$0xff]
      %v976 = vld [vmem:[#allocation12 + $0x28] sm:$0xff]
      %v977 = vld [vmem:[#allocation12 + $0x30] sm:$0xff]
      %v978 = vld [vmem:[#allocation12 + $0x38] sm:$0xff]
      %v979 = vld [vmem:[#allocation12 + $0x40] sm:$0xff]
      %v980 = vld [vmem:[#allocation12 + $0x48] sm:$0xff]
      %v981 = vld [vmem:[#allocation12 + $0x50] sm:$0xff]
      %v982 = vld [vmem:[#allocation12 + $0x58] sm:$0xff]
      %v983 = vld [vmem:[#allocation12 + $0x60] sm:$0xff]
      %v984 = vld [vmem:[#allocation12 + $0x68] sm:$0xff]
      %v985 = vld [vmem:[#allocation12 + $0x70] sm:$0xff]
      %v986 = vld [vmem:[#allocation12 + $0x78] sm:$0xff]
      %988 = vset.pattern.permute.xlu0 0
      %989 = vperm.xlu0 %988, %v361
      %v990 = vpop.permute.xlu0 %989
      %993 = vset.pattern.permute.xlu0 0
      %994 = vperm.xlu0 %993, %v363
      %v995 = vpop.permute.xlu0 %994
      %998 = vset.pattern.permute.xlu0 0
      %999 = vperm.xlu0 %998, %v365
      %v1000 = vpop.permute.xlu0 %999
      %1003 = vset.pattern.permute.xlu0 0
      %1004 = vperm.xlu0 %1003, %v367
      %v1005 = vpop.permute.xlu0 %1004
      %1008 = vset.pattern.permute.xlu0 0
      %1009 = vperm.xlu0 %1008, %v369
      %v1010 = vpop.permute.xlu0 %1009
      %1013 = vset.pattern.permute.xlu0 0
      %1014 = vperm.xlu0 %1013, %v371
      %v1015 = vpop.permute.xlu0 %1014
      %1018 = vset.pattern.permute.xlu0 0
      %1019 = vperm.xlu0 %1018, %v373
      %v1020 = vpop.permute.xlu0 %1019
      %1023 = vset.pattern.permute.xlu0 0
      %1024 = vperm.xlu0 %1023, %v375
      %v1025 = vpop.permute.xlu0 %1024
      %1028 = vset.pattern.permute.xlu0 0
      %1029 = vperm.xlu0 %1028, %v377
      %v1030 = vpop.permute.xlu0 %1029
      %1033 = vset.pattern.permute.xlu0 0
      %1034 = vperm.xlu0 %1033, %v379
      %v1035 = vpop.permute.xlu0 %1034
      %1038 = vset.pattern.permute.xlu0 0
      %1039 = vperm.xlu0 %1038, %v381
      %v1040 = vpop.permute.xlu0 %1039
      %1043 = vset.pattern.permute.xlu0 0
      %1044 = vperm.xlu0 %1043, %v383
      %v1045 = vpop.permute.xlu0 %1044
      %1048 = vset.pattern.permute.xlu0 0
      %1049 = vperm.xlu0 %1048, %v385
      %v1050 = vpop.permute.xlu0 %1049
      %1053 = vset.pattern.permute.xlu0 0
      %1054 = vperm.xlu0 %1053, %v387
      %v1055 = vpop.permute.xlu0 %1054
      %1058 = vset.pattern.permute.xlu0 0
      %1059 = vperm.xlu0 %1058, %v389
      %v1060 = vpop.permute.xlu0 %1059
      %1063 = vset.pattern.permute.xlu0 0
      %1064 = vperm.xlu0 %1063, %v391
      %v1065 = vpop.permute.xlu0 %1064
      %v1067 = vmul.f32 %v990, %v971
      %v1068 = vmul.f32 %v995, %v972
      %v1069 = vmul.f32 %v1000, %v973
      %v1070 = vmul.f32 %v1005, %v974
      %v1071 = vmul.f32 %v1010, %v975
      %v1072 = vmul.f32 %v1015, %v976
      %v1073 = vmul.f32 %v1020, %v977
      %v1074 = vmul.f32 %v1025, %v978
      %v1075 = vmul.f32 %v1030, %v979
      %v1076 = vmul.f32 %v1035, %v980
      %v1077 = vmul.f32 %v1040, %v981
      %v1078 = vmul.f32 %v1045, %v982
      %v1079 = vmul.f32 %v1050, %v983
      %v1080 = vmul.f32 %v1055, %v984
      %v1081 = vmul.f32 %v1060, %v985
      %v1082 = vmul.f32 %v1065, %v986
      %1083 = vmatpush.msra.mxu0 %v969
      %1084 = vmatpush.msra.mxu0 %v967
      %1085 = vmatpush.msra.mxu0 %v964
      %1086 = vmatpush.msra.mxu0 %v962
      %1087 = vmatpush.msra.mxu0 %v959
      %1088 = vmatpush.msra.mxu0 %v957
      %1089 = vmatpush.msra.mxu0 %v954
      %1090 = vmatpush.msra.mxu0 %v952
      %1091 = vmatpush.msra.mxu0 %v949
      %1092 = vmatpush.msra.mxu0 %v947
      %1093 = vmatpush.msra.mxu0 %v944
      %1094 = vmatpush.msra.mxu0 %v942
      %1095 = vmatpush.msra.mxu0 %v939
      %1096 = vmatpush.msra.mxu0 %v937
      %1097 = vmatpush.msra.mxu0 %v934
      %1098 = vmatpush.msra.mxu0 %v932
      %1099 = vmatmul.f32.gmra.mxu0 %v505
      %v1100 = vpop.f32.mrf.mxu0
      %v1101 = vadd.f32 0.0, %v1100
      %1102 = vmatmul.f32.gmra.mxu0 %v507
      %v1103 = vpop.f32.mrf.mxu0
      %v1104 = vadd.f32 0.0, %v1103
      %1105 = vmatmul.f32.gmra.mxu0 %v509
      %v1106 = vpop.f32.mrf.mxu0
      %v1107 = vadd.f32 0.0, %v1106
      %1108 = vmatmul.f32.gmra.mxu0 %v511
      %v1109 = vpop.f32.mrf.mxu0
      %v1110 = vadd.f32 0.0, %v1109
      %1111 = vmatmul.f32.gmra.mxu0 %v513
      %v1112 = vpop.f32.mrf.mxu0
      %v1113 = vadd.f32 0.0, %v1112
      %1114 = vmatmul.f32.gmra.mxu0 %v515
      %v1115 = vpop.f32.mrf.mxu0
      %v1116 = vadd.f32 0.0, %v1115
      %1117 = vmatmul.f32.gmra.mxu0 %v517
      %v1118 = vpop.f32.mrf.mxu0
      %v1119 = vadd.f32 0.0, %v1118
      %1120 = vmatmul.f32.gmra.mxu0 %v519
      %v1121 = vpop.f32.mrf.mxu0
      %v1122 = vadd.f32 0.0, %v1121
      %1123 = vmatmul.f32.gmra.mxu0 %v521
      %v1124 = vpop.f32.mrf.mxu0
      %v1125 = vadd.f32 0.0, %v1124
      %1126 = vmatmul.f32.gmra.mxu0 %v523
      %v1127 = vpop.f32.mrf.mxu0
      %v1128 = vadd.f32 0.0, %v1127
      %1129 = vmatmul.f32.gmra.mxu0 %v525
      %v1130 = vpop.f32.mrf.mxu0
      %v1131 = vadd.f32 0.0, %v1130
      %1132 = vmatmul.f32.gmra.mxu0 %v527
      %v1133 = vpop.f32.mrf.mxu0
      %v1134 = vadd.f32 0.0, %v1133
      %1135 = vmatmul.f32.gmra.mxu0 %v529
      %v1136 = vpop.f32.mrf.mxu0
      %v1137 = vadd.f32 0.0, %v1136
      %1138 = vmatmul.f32.gmra.mxu0 %v531
      %v1139 = vpop.f32.mrf.mxu0
      %v1140 = vadd.f32 0.0, %v1139
      %1141 = vmatmul.f32.gmra.mxu0 %v533
      %v1142 = vpop.f32.mrf.mxu0
      %v1143 = vadd.f32 0.0, %v1142
      %1144 = vmatmul.f32.gmra.mxu0 %v535
      %v1145 = vpop.f32.mrf.mxu0
      %v1146 = vadd.f32 0.0, %v1145
      %1147 = vdwg.mxu0
      %v1148 = vadd.f32 %v1067, %v1101
      %v1149 = vadd.f32 %v1068, %v1104
      %v1150 = vadd.f32 %v1069, %v1107
      %v1151 = vadd.f32 %v1070, %v1110
      %v1152 = vadd.f32 %v1071, %v1113
      %v1153 = vadd.f32 %v1072, %v1116
      %v1154 = vadd.f32 %v1073, %v1119
      %v1155 = vadd.f32 %v1074, %v1122
      %v1156 = vadd.f32 %v1075, %v1125
      %v1157 = vadd.f32 %v1076, %v1128
      %v1158 = vadd.f32 %v1077, %v1131
      %v1159 = vadd.f32 %v1078, %v1134
      %v1160 = vadd.f32 %v1079, %v1137
      %v1161 = vadd.f32 %v1080, %v1140
      %v1162 = vadd.f32 %v1081, %v1143
      %v1163 = vadd.f32 %v1082, %v1146
      %1164 = vst [vmem:[#allocation12] sm:$0xff] %v1148
      %1165 = vst [vmem:[#allocation12 + $0x8] sm:$0xff] %v1149
      %1166 = vst [vmem:[#allocation12 + $0x10] sm:$0xff] %v1150
      %1167 = vst [vmem:[#allocation12 + $0x18] sm:$0xff] %v1151
      %1168 = vst [vmem:[#allocation12 + $0x20] sm:$0xff] %v1152
      %1169 = vst [vmem:[#allocation12 + $0x28] sm:$0xff] %v1153
      %1170 = vst [vmem:[#allocation12 + $0x30] sm:$0xff] %v1154
      %1171 = vst [vmem:[#allocation12 + $0x38] sm:$0xff] %v1155
      %1172 = vst [vmem:[#allocation12 + $0x40] sm:$0xff] %v1156
      %1173 = vst [vmem:[#allocation12 + $0x48] sm:$0xff] %v1157
      %1174 = vst [vmem:[#allocation12 + $0x50] sm:$0xff] %v1158
      %1175 = vst [vmem:[#allocation12 + $0x58] sm:$0xff] %v1159
      %1176 = vst [vmem:[#allocation12 + $0x60] sm:$0xff] %v1160
      %1177 = vst [vmem:[#allocation12 + $0x68] sm:$0xff] %v1161
      %1178 = vst [vmem:[#allocation12 + $0x70] sm:$0xff] %v1162
      %1179 = vst [vmem:[#allocation12 + $0x78] sm:$0xff] %v1163
    $region33: #{tpu_custom_call.1} parent=1 // pred_fallthru
      _
    // Predicated region
    $region34: #{tpu_custom_call.1} parent=1 // pred_check
      %p1180 = pneg %p149
    $region35: #{tpu_custom_call.1} parent=1 // pred_check_branch
      %1182 = sbr.rel (%p1180) target = $region37
    $region36: #{tpu_custom_call.1} parent=1 // pred_region
      %v1183 = vld [vmem:[#allocation3] sm:$0xff]
      %v1184 = vld [vmem:[#allocation3 + $0x8] sm:$0xff]
      %v1185 = vld [vmem:[#allocation3 + $0x10] sm:$0xff]
      %v1186 = vld [vmem:[#allocation3 + $0x18] sm:$0xff]
      %v1187 = vld [vmem:[#allocation3 + $0x20] sm:$0xff]
      %v1188 = vld [vmem:[#allocation3 + $0x28] sm:$0xff]
      %v1189 = vld [vmem:[#allocation3 + $0x30] sm:$0xff]
      %v1190 = vld [vmem:[#allocation3 + $0x38] sm:$0xff]
      %v1191 = vld [vmem:[#allocation3 + $0x40] sm:$0xff]
      %v1192 = vld [vmem:[#allocation3 + $0x48] sm:$0xff]
      %v1193 = vld [vmem:[#allocation3 + $0x50] sm:$0xff]
      %v1194 = vld [vmem:[#allocation3 + $0x58] sm:$0xff]
      %v1195 = vld [vmem:[#allocation3 + $0x60] sm:$0xff]
      %v1196 = vld [vmem:[#allocation3 + $0x68] sm:$0xff]
      %v1197 = vld [vmem:[#allocation3 + $0x70] sm:$0xff]
      %v1198 = vld [vmem:[#allocation3 + $0x78] sm:$0xff]
      %vm1199 = vcmp.gt.f32.partialorder %v1183, 0.0
      %vm1200 = vcmp.gt.f32.partialorder %v1184, 0.0
      %vm1201 = vcmp.gt.f32.partialorder %v1185, 0.0
      %vm1202 = vcmp.gt.f32.partialorder %v1186, 0.0
      %vm1203 = vcmp.gt.f32.partialorder %v1187, 0.0
      %vm1204 = vcmp.gt.f32.partialorder %v1188, 0.0
      %vm1205 = vcmp.gt.f32.partialorder %v1189, 0.0
      %vm1206 = vcmp.gt.f32.partialorder %v1190, 0.0
      %vm1207 = vcmp.gt.f32.partialorder %v1191, 0.0
      %vm1208 = vcmp.gt.f32.partialorder %v1192, 0.0
      %vm1209 = vcmp.gt.f32.partialorder %v1193, 0.0
      %vm1210 = vcmp.gt.f32.partialorder %v1194, 0.0
      %vm1211 = vcmp.gt.f32.partialorder %v1195, 0.0
      %vm1212 = vcmp.gt.f32.partialorder %v1196, 0.0
      %vm1213 = vcmp.gt.f32.partialorder %v1197, 0.0
      %vm1214 = vcmp.gt.f32.partialorder %v1198, 0.0
      %v1215 = vsel %vm1199, %v1183, 1.0
      %v1216 = vsel %vm1200, %v1184, 1.0
      %v1217 = vsel %vm1201, %v1185, 1.0
      %v1218 = vsel %vm1202, %v1186, 1.0
      %v1219 = vsel %vm1203, %v1187, 1.0
      %v1220 = vsel %vm1204, %v1188, 1.0
      %v1221 = vsel %vm1205, %v1189, 1.0
      %v1222 = vsel %vm1206, %v1190, 1.0
      %v1223 = vsel %vm1207, %v1191, 1.0
      %v1224 = vsel %vm1208, %v1192, 1.0
      %v1225 = vsel %vm1209, %v1193, 1.0
      %v1226 = vsel %vm1210, %v1194, 1.0
      %v1227 = vsel %vm1211, %v1195, 1.0
      %v1228 = vsel %vm1212, %v1196, 1.0
      %v1229 = vsel %vm1213, %v1197, 1.0
      %v1230 = vsel %vm1214, %v1198, 1.0
      %v1231 = vld [vmem:[#allocation12] sm:$0xff]
      %v1232 = vld [vmem:[#allocation12 + $0x8] sm:$0xff]
      %v1233 = vld [vmem:[#allocation12 + $0x10] sm:$0xff]
      %v1234 = vld [vmem:[#allocation12 + $0x18] sm:$0xff]
      %v1235 = vld [vmem:[#allocation12 + $0x20] sm:$0xff]
      %v1236 = vld [vmem:[#allocation12 + $0x28] sm:$0xff]
      %v1237 = vld [vmem:[#allocation12 + $0x30] sm:$0xff]
      %v1238 = vld [vmem:[#allocation12 + $0x38] sm:$0xff]
      %v1239 = vld [vmem:[#allocation12 + $0x40] sm:$0xff]
      %v1240 = vld [vmem:[#allocation12 + $0x48] sm:$0xff]
      %v1241 = vld [vmem:[#allocation12 + $0x50] sm:$0xff]
      %v1242 = vld [vmem:[#allocation12 + $0x58] sm:$0xff]
      %v1243 = vld [vmem:[#allocation12 + $0x60] sm:$0xff]
      %v1244 = vld [vmem:[#allocation12 + $0x68] sm:$0xff]
      %v1245 = vld [vmem:[#allocation12 + $0x70] sm:$0xff]
      %v1246 = vld [vmem:[#allocation12 + $0x78] sm:$0xff]
      %v1247 = vrcp.pop %v1215
      %v1248 = vmul.f32 %v1215, %v1247
      %v1249 = vsub.f32 1.0, %v1248
      %v1250 = vmul.f32 %v1247, %v1249
      %v1251 = vadd.f32 %v1247, %v1250
      %vm1252 = vweird.f32 %v1215
      %vm1253 = vweird.f32 %v1247
      %vm1254 = vmor %vm1252, %vm1253
      %v1255 = vsel %vm1254, %v1247, %v1251
      %v1256 = vand.u32 2147483647, %v1215
      %vm1257 = vcmp.eq.f32.partialorder %v1256, 8.507059e+37
      %v1258 = vand.u32 %v1215, 2147483648
      %v1259 = vor.u32 1.1754944e-38, %v1258
      %v1260 = vsel %vm1257, %v1259, %v1255
      %v1261 = vrcp.pop %v1216
      %v1262 = vmul.f32 %v1216, %v1261
      %v1263 = vsub.f32 1.0, %v1262
      %v1264 = vmul.f32 %v1261, %v1263
      %v1265 = vadd.f32 %v1261, %v1264
      %vm1266 = vweird.f32 %v1216
      %vm1267 = vweird.f32 %v1261
      %vm1268 = vmor %vm1266, %vm1267
      %v1269 = vsel %vm1268, %v1261, %v1265
      %v1270 = vand.u32 2147483647, %v1216
      %vm1271 = vcmp.eq.f32.partialorder %v1270, 8.507059e+37
      %v1272 = vand.u32 %v1216, 2147483648
      %v1273 = vor.u32 1.1754944e-38, %v1272
      %v1274 = vsel %vm1271, %v1273, %v1269
      %v1275 = vrcp.pop %v1217
      %v1276 = vmul.f32 %v1217, %v1275
      %v1277 = vsub.f32 1.0, %v1276
      %v1278 = vmul.f32 %v1275, %v1277
      %v1279 = vadd.f32 %v1275, %v1278
      %vm1280 = vweird.f32 %v1217
      %vm1281 = vweird.f32 %v1275
      %vm1282 = vmor %vm1280, %vm1281
      %v1283 = vsel %vm1282, %v1275, %v1279
      %v1284 = vand.u32 2147483647, %v1217
      %vm1285 = vcmp.eq.f32.partialorder %v1284, 8.507059e+37
      %v1286 = vand.u32 %v1217, 2147483648
      %v1287 = vor.u32 1.1754944e-38, %v1286
      %v1288 = vsel %vm1285, %v1287, %v1283
      %v1289 = vrcp.pop %v1218
      %v1290 = vmul.f32 %v1218, %v1289
      %v1291 = vsub.f32 1.0, %v1290
      %v1292 = vmul.f32 %v1289, %v1291
      %v1293 = vadd.f32 %v1289, %v1292
      %vm1294 = vweird.f32 %v1218
      %vm1295 = vweird.f32 %v1289
      %vm1296 = vmor %vm1294, %vm1295
      %v1297 = vsel %vm1296, %v1289, %v1293
      %v1298 = vand.u32 2147483647, %v1218
      %vm1299 = vcmp.eq.f32.partialorder %v1298, 8.507059e+37
      %v1300 = vand.u32 %v1218, 2147483648
      %v1301 = vor.u32 1.1754944e-38, %v1300
      %v1302 = vsel %vm1299, %v1301, %v1297
      %v1303 = vrcp.pop %v1219
      %v1304 = vmul.f32 %v1219, %v1303
      %v1305 = vsub.f32 1.0, %v1304
      %v1306 = vmul.f32 %v1303, %v1305
      %v1307 = vadd.f32 %v1303, %v1306
      %vm1308 = vweird.f32 %v1219
      %vm1309 = vweird.f32 %v1303
      %vm1310 = vmor %vm1308, %vm1309
      %v1311 = vsel %vm1310, %v1303, %v1307
      %v1312 = vand.u32 2147483647, %v1219
      %vm1313 = vcmp.eq.f32.partialorder %v1312, 8.507059e+37
      %v1314 = vand.u32 %v1219, 2147483648
      %v1315 = vor.u32 1.1754944e-38, %v1314
      %v1316 = vsel %vm1313, %v1315, %v1311
      %v1317 = vrcp.pop %v1220
      %v1318 = vmul.f32 %v1220, %v1317
      %v1319 = vsub.f32 1.0, %v1318
      %v1320 = vmul.f32 %v1317, %v1319
      %v1321 = vadd.f32 %v1317, %v1320
      %vm1322 = vweird.f32 %v1220
      %vm1323 = vweird.f32 %v1317
      %vm1324 = vmor %vm1322, %vm1323
      %v1325 = vsel %vm1324, %v1317, %v1321
      %v1326 = vand.u32 2147483647, %v1220
      %vm1327 = vcmp.eq.f32.partialorder %v1326, 8.507059e+37
      %v1328 = vand.u32 %v1220, 2147483648
      %v1329 = vor.u32 1.1754944e-38, %v1328
      %v1330 = vsel %vm1327, %v1329, %v1325
      %v1331 = vrcp.pop %v1221
      %v1332 = vmul.f32 %v1221, %v1331
      %v1333 = vsub.f32 1.0, %v1332
      %v1334 = vmul.f32 %v1331, %v1333
      %v1335 = vadd.f32 %v1331, %v1334
      %vm1336 = vweird.f32 %v1221
      %vm1337 = vweird.f32 %v1331
      %vm1338 = vmor %vm1336, %vm1337
      %v1339 = vsel %vm1338, %v1331, %v1335
      %v1340 = vand.u32 2147483647, %v1221
      %vm1341 = vcmp.eq.f32.partialorder %v1340, 8.507059e+37
      %v1342 = vand.u32 %v1221, 2147483648
      %v1343 = vor.u32 1.1754944e-38, %v1342
      %v1344 = vsel %vm1341, %v1343, %v1339
      %v1345 = vrcp.pop %v1222
      %v1346 = vmul.f32 %v1222, %v1345
      %v1347 = vsub.f32 1.0, %v1346
      %v1348 = vmul.f32 %v1345, %v1347
      %v1349 = vadd.f32 %v1345, %v1348
      %vm1350 = vweird.f32 %v1222
      %vm1351 = vweird.f32 %v1345
      %vm1352 = vmor %vm1350, %vm1351
      %v1353 = vsel %vm1352, %v1345, %v1349
      %v1354 = vand.u32 2147483647, %v1222
      %vm1355 = vcmp.eq.f32.partialorder %v1354, 8.507059e+37
      %v1356 = vand.u32 %v1222, 2147483648
      %v1357 = vor.u32 1.1754944e-38, %v1356
      %v1358 = vsel %vm1355, %v1357, %v1353
      %v1359 = vrcp.pop %v1223
      %v1360 = vmul.f32 %v1223, %v1359
      %v1361 = vsub.f32 1.0, %v1360
      %v1362 = vmul.f32 %v1359, %v1361
      %v1363 = vadd.f32 %v1359, %v1362
      %vm1364 = vweird.f32 %v1223
      %vm1365 = vweird.f32 %v1359
      %vm1366 = vmor %vm1364, %vm1365
      %v1367 = vsel %vm1366, %v1359, %v1363
      %v1368 = vand.u32 2147483647, %v1223
      %vm1369 = vcmp.eq.f32.partialorder %v1368, 8.507059e+37
      %v1370 = vand.u32 %v1223, 2147483648
      %v1371 = vor.u32 1.1754944e-38, %v1370
      %v1372 = vsel %vm1369, %v1371, %v1367
      %v1373 = vrcp.pop %v1224
      %v1374 = vmul.f32 %v1224, %v1373
      %v1375 = vsub.f32 1.0, %v1374
      %v1376 = vmul.f32 %v1373, %v1375
      %v1377 = vadd.f32 %v1373, %v1376
      %vm1378 = vweird.f32 %v1224
      %vm1379 = vweird.f32 %v1373
      %vm1380 = vmor %vm1378, %vm1379
      %v1381 = vsel %vm1380, %v1373, %v1377
      %v1382 = vand.u32 2147483647, %v1224
      %vm1383 = vcmp.eq.f32.partialorder %v1382, 8.507059e+37
      %v1384 = vand.u32 %v1224, 2147483648
      %v1385 = vor.u32 1.1754944e-38, %v1384
      %v1386 = vsel %vm1383, %v1385, %v1381
      %v1387 = vrcp.pop %v1225
      %v1388 = vmul.f32 %v1225, %v1387
      %v1389 = vsub.f32 1.0, %v1388
      %v1390 = vmul.f32 %v1387, %v1389
      %v1391 = vadd.f32 %v1387, %v1390
      %vm1392 = vweird.f32 %v1225
      %vm1393 = vweird.f32 %v1387
      %vm1394 = vmor %vm1392, %vm1393
      %v1395 = vsel %vm1394, %v1387, %v1391
      %v1396 = vand.u32 2147483647, %v1225
      %vm1397 = vcmp.eq.f32.partialorder %v1396, 8.507059e+37
      %v1398 = vand.u32 %v1225, 2147483648
      %v1399 = vor.u32 1.1754944e-38, %v1398
      %v1400 = vsel %vm1397, %v1399, %v1395
      %v1401 = vrcp.pop %v1226
      %v1402 = vmul.f32 %v1226, %v1401
      %v1403 = vsub.f32 1.0, %v1402
      %v1404 = vmul.f32 %v1401, %v1403
      %v1405 = vadd.f32 %v1401, %v1404
      %vm1406 = vweird.f32 %v1226
      %vm1407 = vweird.f32 %v1401
      %vm1408 = vmor %vm1406, %vm1407
      %v1409 = vsel %vm1408, %v1401, %v1405
      %v1410 = vand.u32 2147483647, %v1226
      %vm1411 = vcmp.eq.f32.partialorder %v1410, 8.507059e+37
      %v1412 = vand.u32 %v1226, 2147483648
      %v1413 = vor.u32 1.1754944e-38, %v1412
      %v1414 = vsel %vm1411, %v1413, %v1409
      %v1415 = vrcp.pop %v1227
      %v1416 = vmul.f32 %v1227, %v1415
      %v1417 = vsub.f32 1.0, %v1416
      %v1418 = vmul.f32 %v1415, %v1417
      %v1419 = vadd.f32 %v1415, %v1418
      %vm1420 = vweird.f32 %v1227
      %vm1421 = vweird.f32 %v1415
      %vm1422 = vmor %vm1420, %vm1421
      %v1423 = vsel %vm1422, %v1415, %v1419
      %v1424 = vand.u32 2147483647, %v1227
      %vm1425 = vcmp.eq.f32.partialorder %v1424, 8.507059e+37
      %v1426 = vand.u32 %v1227, 2147483648
      %v1427 = vor.u32 1.1754944e-38, %v1426
      %v1428 = vsel %vm1425, %v1427, %v1423
      %v1429 = vrcp.pop %v1228
      %v1430 = vmul.f32 %v1228, %v1429
      %v1431 = vsub.f32 1.0, %v1430
      %v1432 = vmul.f32 %v1429, %v1431
      %v1433 = vadd.f32 %v1429, %v1432
      %vm1434 = vweird.f32 %v1228
      %vm1435 = vweird.f32 %v1429
      %vm1436 = vmor %vm1434, %vm1435
      %v1437 = vsel %vm1436, %v1429, %v1433
      %v1438 = vand.u32 2147483647, %v1228
      %vm1439 = vcmp.eq.f32.partialorder %v1438, 8.507059e+37
      %v1440 = vand.u32 %v1228, 2147483648
      %v1441 = vor.u32 1.1754944e-38, %v1440
      %v1442 = vsel %vm1439, %v1441, %v1437
      %v1443 = vrcp.pop %v1229
      %v1444 = vmul.f32 %v1229, %v1443
      %v1445 = vsub.f32 1.0, %v1444
      %v1446 = vmul.f32 %v1443, %v1445
      %v1447 = vadd.f32 %v1443, %v1446
      %vm1448 = vweird.f32 %v1229
      %vm1449 = vweird.f32 %v1443
      %vm1450 = vmor %vm1448, %vm1449
      %v1451 = vsel %vm1450, %v1443, %v1447
      %v1452 = vand.u32 2147483647, %v1229
      %vm1453 = vcmp.eq.f32.partialorder %v1452, 8.507059e+37
      %v1454 = vand.u32 %v1229, 2147483648
      %v1455 = vor.u32 1.1754944e-38, %v1454
      %v1456 = vsel %vm1453, %v1455, %v1451
      %v1457 = vrcp.pop %v1230
      %v1458 = vmul.f32 %v1230, %v1457
      %v1459 = vsub.f32 1.0, %v1458
      %v1460 = vmul.f32 %v1457, %v1459
      %v1461 = vadd.f32 %v1457, %v1460
      %vm1462 = vweird.f32 %v1230
      %vm1463 = vweird.f32 %v1457
      %vm1464 = vmor %vm1462, %vm1463
      %v1465 = vsel %vm1464, %v1457, %v1461
      %v1466 = vand.u32 2147483647, %v1230
      %vm1467 = vcmp.eq.f32.partialorder %v1466, 8.507059e+37
      %v1468 = vand.u32 %v1230, 2147483648
      %v1469 = vor.u32 1.1754944e-38, %v1468
      %v1470 = vsel %vm1467, %v1469, %v1465
      %1472 = vset.pattern.permute.xlu0 0
      %1473 = vperm.xlu0 %1472, %v1260
      %v1474 = vpop.permute.xlu0 %1473
      %1477 = vset.pattern.permute.xlu0 0
      %1478 = vperm.xlu0 %1477, %v1274
      %v1479 = vpop.permute.xlu0 %1478
      %1482 = vset.pattern.permute.xlu0 0
      %1483 = vperm.xlu0 %1482, %v1288
      %v1484 = vpop.permute.xlu0 %1483
      %1487 = vset.pattern.permute.xlu0 0
      %1488 = vperm.xlu0 %1487, %v1302
      %v1489 = vpop.permute.xlu0 %1488
      %1492 = vset.pattern.permute.xlu0 0
      %1493 = vperm.xlu0 %1492, %v1316
      %v1494 = vpop.permute.xlu0 %1493
      %1497 = vset.pattern.permute.xlu0 0
      %1498 = vperm.xlu0 %1497, %v1330
      %v1499 = vpop.permute.xlu0 %1498
      %1502 = vset.pattern.permute.xlu0 0
      %1503 = vperm.xlu0 %1502, %v1344
      %v1504 = vpop.permute.xlu0 %1503
      %1507 = vset.pattern.permute.xlu0 0
      %1508 = vperm.xlu0 %1507, %v1358
      %v1509 = vpop.permute.xlu0 %1508
      %1512 = vset.pattern.permute.xlu0 0
      %1513 = vperm.xlu0 %1512, %v1372
      %v1514 = vpop.permute.xlu0 %1513
      %1517 = vset.pattern.permute.xlu0 0
      %1518 = vperm.xlu0 %1517, %v1386
      %v1519 = vpop.permute.xlu0 %1518
      %1522 = vset.pattern.permute.xlu0 0
      %1523 = vperm.xlu0 %1522, %v1400
      %v1524 = vpop.permute.xlu0 %1523
      %1527 = vset.pattern.permute.xlu0 0
      %1528 = vperm.xlu0 %1527, %v1414
      %v1529 = vpop.permute.xlu0 %1528
      %1532 = vset.pattern.permute.xlu0 0
      %1533 = vperm.xlu0 %1532, %v1428
      %v1534 = vpop.permute.xlu0 %1533
      %1537 = vset.pattern.permute.xlu0 0
      %1538 = vperm.xlu0 %1537, %v1442
      %v1539 = vpop.permute.xlu0 %1538
      %1542 = vset.pattern.permute.xlu0 0
      %1543 = vperm.xlu0 %1542, %v1456
      %v1544 = vpop.permute.xlu0 %1543
      %1547 = vset.pattern.permute.xlu0 0
      %1548 = vperm.xlu0 %1547, %v1470
      %v1549 = vpop.permute.xlu0 %1548
      %v1551 = vmul.f32 %v1231, %v1474
      %v1552 = vmul.f32 %v1232, %v1479
      %v1553 = vmul.f32 %v1233, %v1484
      %v1554 = vmul.f32 %v1234, %v1489
      %v1555 = vmul.f32 %v1235, %v1494
      %v1556 = vmul.f32 %v1236, %v1499
      %v1557 = vmul.f32 %v1237, %v1504
      %v1558 = vmul.f32 %v1238, %v1509
      %v1559 = vmul.f32 %v1239, %v1514
      %v1560 = vmul.f32 %v1240, %v1519
      %v1561 = vmul.f32 %v1241, %v1524
      %v1562 = vmul.f32 %v1242, %v1529
      %v1563 = vmul.f32 %v1243, %v1534
      %v1564 = vmul.f32 %v1244, %v1539
      %v1565 = vmul.f32 %v1245, %v1544
      %v1566 = vmul.f32 %v1246, %v1549
      %v1567 = vtanh.pop %v1551
      %v1568 = vtanh.pop %v1552
      %v1569 = vtanh.pop %v1553
      %v1570 = vtanh.pop %v1554
      %v1571 = vtanh.pop %v1555
      %v1572 = vtanh.pop %v1556
      %v1573 = vtanh.pop %v1557
      %v1574 = vtanh.pop %v1558
      %v1575 = vtanh.pop %v1559
      %v1576 = vtanh.pop %v1560
      %v1577 = vtanh.pop %v1561
      %v1578 = vtanh.pop %v1562
      %v1579 = vtanh.pop %v1563
      %v1580 = vtanh.pop %v1564
      %v1581 = vtanh.pop %v1565
      %v1582 = vtanh.pop %v1566
      %1583 = vst [vmem:[#allocation12] sm:$0xff] %v1567
      %1584 = vst [vmem:[#allocation12 + $0x8] sm:$0xff] %v1568
      %1585 = vst [vmem:[#allocation12 + $0x10] sm:$0xff] %v1569
      %1586 = vst [vmem:[#allocation12 + $0x18] sm:$0xff] %v1570
      %1587 = vst [vmem:[#allocation12 + $0x20] sm:$0xff] %v1571
      %1588 = vst [vmem:[#allocation12 + $0x28] sm:$0xff] %v1572
      %1589 = vst [vmem:[#allocation12 + $0x30] sm:$0xff] %v1573
      %1590 = vst [vmem:[#allocation12 + $0x38] sm:$0xff] %v1574
      %1591 = vst [vmem:[#allocation12 + $0x40] sm:$0xff] %v1575
      %1592 = vst [vmem:[#allocation12 + $0x48] sm:$0xff] %v1576
      %1593 = vst [vmem:[#allocation12 + $0x50] sm:$0xff] %v1577
      %1594 = vst [vmem:[#allocation12 + $0x58] sm:$0xff] %v1578
      %1595 = vst [vmem:[#allocation12 + $0x60] sm:$0xff] %v1579
      %1596 = vst [vmem:[#allocation12 + $0x68] sm:$0xff] %v1580
      %1597 = vst [vmem:[#allocation12 + $0x70] sm:$0xff] %v1581
      %1598 = vst [vmem:[#allocation12 + $0x78] sm:$0xff] %v1582
    $region37: #{tpu_custom_call.1} parent=1 // pred_fallthru
      _
    // Predicated region
    $region38: #{tpu_custom_call.1} parent=1 // pred_check
      _
    $region39: #{tpu_custom_call.1} parent=1 // pred_check_branch
      %1600 = sbr.rel (0) target = $region41
    $region40: #{tpu_custom_call.1} parent=1 // pred_region
      %1602 = vsyncadd [#allocation9], 0
      %s1603 = sshll.u32 [#allocation12], 4
      %s1604 = int_to_ptr.vmem [resolvable:$true] %s1603
      %s1605 = sshll.u32 %s6, 4
      %s1606 = int_to_ptr.hbm [resolvable:$true] %s1605
      %1611 = dma.vmem_to_hbm [thread:$0]  %s1604, 2048, %s1606, [#allocation9], 128, 128, 8
    $region41: #{tpu_custom_call.1} parent=1 // pred_fallthru
      _
    // Predicated region
    $region42: #{tpu_custom_call.1} parent=1 // pred_check
      _
    $region43: #{tpu_custom_call.1} parent=1 // pred_check_branch
      %1613 = sbr.rel (0) target = $region45
    $region44: #{tpu_custom_call.1} parent=1 // pred_region
      %1615 = dma.done [#allocation9], 2048
    $region45: #{tpu_custom_call.1} parent=1 // pred_fallthru
      _
    %1616 = vsyncpa [#allocation8], 1
    %1617 = vsyncpa [#allocation11], 1
    %1618 = vsyncpa [#allocation9], 1

</llo_original>
